<compile_context>
chip_gen: v7x
topology: tpu7x:2x2x1
jax: 0.10.0
libtpu: 0.0.40
codegen_flags: <defaults>
</compile_context>

<pallas_src>
import functools

import jax
import jax.numpy as jnp
from jax.experimental import pallas as pl
from jax.experimental.pallas import tpu as pltpu


# Target rows (M = B*N frames) per grid step.  ~512 rows is the measured
# HBM-roofline sweet spot (≈85% of roofline vs ≈29% at 128-row tiles).  At
# TM=512 the double-buffered per-step working set of every kernel below is
# well under the 32 MiB default scoped VMEM window (v5e/v6e) and under v7x's
# 64 MiB physical VMEM, so no vmem_limit_bytes override is needed.
TILE_M = 512


def _choose_tile(m, target=TILE_M):
    """Pick the M-tile: a multiple of 128 so every block (bf16 row tiles, the
    [M, K*D] q slab and the lane-dense [K, M] token rows) stays unmasked and
    lane-aligned, capped at `target`.  Prefer >= 4 grid steps (v7x shards the
    'parallel' axis across 2 TensorCores and wants >= 2 steps per core for
    DMA/compute overlap) before shrinking, but never drop below 128 rows
    (per-step overhead would dominate)."""
    if m <= 128:
        return m                                  # single full block (legal)
    t = min(target, (m // 128) * 128)
    while t > 128 and -(-m // t) < 4:
        t = max(128, ((t // 2) // 128) * 128)
    return t


def _pad_rows(x, m_pad, axis=0):
    """Pad axis `axis` of x up to m_pad rows with zeros (row-independent
    kernels -> padded rows are simply sliced off the outputs)."""
    m = x.shape[axis]
    if m_pad == m:
        return x
    pad = [(0, 0)] * x.ndim
    pad[axis] = (0, m_pad - m)
    return jnp.pad(x, pad)


# ----------------------------------------------------------------------------
# In-kernel helpers
# ----------------------------------------------------------------------------
def _vq_head(xk, cb, c2_col):
    """Nearest-code search for one head on one M-tile.

    xk [TM, D] bf16, cb [C, D] bf16 (resident), c2_col [C, 1] f32.
    Returns (idx [1, TM] i32 lane-dense, qk [TM, D] f32).

    The distance matrix is kept transposed ([C, TM], M on lanes): the argmin
    becomes a sublane reduction and the token row is already lane-dense, so
    the [K, M] token output needs no relayout.  The x^2 term is row-constant
    and dropped: argmin_c ||x - cb_c||^2 == argmin_c (||cb_c||^2 - 2 x.cb_c).
    """
    xc = jax.lax.dot_general(cb, xk, (((1,), (1,)), ((), ())),
                             preferred_element_type=jnp.float32)     # [C, TM]
    dist = c2_col - 2.0 * xc                                          # f32
    n_codes = dist.shape[0]
    min_d = jnp.min(dist, axis=0, keepdims=True)                      # [1, TM]
    iota_c = jax.lax.broadcasted_iota(jnp.int32, dist.shape, 0)
    idx = jnp.min(jnp.where(dist <= min_d, iota_c, n_codes),
                  axis=0, keepdims=True)                              # [1, TM]
    # Reconstruction via a one-hot MXU pass (0/1 exact in bf16).
    # TODO(synk): for production C a gather of the winning codebook row (and a
    # C-tiled running min/argmin) would drop this second MXU pass and keep the
    # distance tile out of VMEM; kept as a matmul for guaranteed lowering.
    onehot = (iota_c == idx).astype(jnp.bfloat16)                     # [C, TM]
    qk = jax.lax.dot_general(onehot, cb, (((0,), (0,)), ((), ())),
                             preferred_element_type=jnp.float32)      # [TM, D]
    return idx, qk


def _to_bf16(x):
    return x if x.dtype == jnp.bfloat16 else x.astype(jnp.bfloat16)


# ----------------------------------------------------------------------------
# Pallas kernels
# ----------------------------------------------------------------------------
def _linear_kernel(x_ref, w_ref, b_ref, o_ref, *, activation):
    # bf16 operands on the MXU, f32 accumulate; bias add / tanh stay in f32.
    y = jnp.dot(_to_bf16(x_ref[...]), w_ref[...],
                preferred_element_type=jnp.float32) + b_ref[...]
    if activation == "tanh":
        y = jnp.tanh(y)
    o_ref[...] = y.astype(o_ref.dtype)


def _encoder_kernel(x_ref, w_ref, b_ref, o_ref, *, n_heads, d):
    # [TM, F] @ [F, K*D] -> tanh -> per-head [TM, D] slabs written straight
    # into the [K, M, D] output (no XLA transpose after the kernel).
    y = jnp.tanh(jnp.dot(_to_bf16(x_ref[...]), w_ref[...],
                         preferred_element_type=jnp.float32) + b_ref[...])
    for k in range(n_heads):                         # static unroll, K small
        o_ref[k] = y[:, k * d:(k + 1) * d].astype(o_ref.dtype)


def _vq_kernel(x_ref, cb_ref, c2_ref, *out_refs, n_heads, d, want_tokens):
    """All-heads VQ on one M-tile (staged path)."""
    if want_tokens:
        toks_ref, q_ref = out_refs
    else:
        (q_ref,) = out_refs
    for k in range(n_heads):                         # static unroll, K small
        idx, qk = _vq_head(x_ref[k], cb_ref[k], c2_ref[k])
        if want_tokens:
            toks_ref[k:k + 1, :] = idx               # lane-dense [1, TM] row
        q_ref[:, k * d:(k + 1) * d] = qk.astype(q_ref.dtype)


def _codec_fwd_kernel(x_ref, we_ref, be_ref, cb_ref, c2_ref, wdv_ref, bdv_ref,
                      o_ref, *, n_heads, d):
    """Fully fused forward on one M-tile:
       encoder GEMM+tanh -> per-head VQ -> fused dequantizer+vocoder GEMM+tanh.
       feats / qfeats never leave VMEM (no intermediate HBM round-trips)."""
    y = jnp.tanh(jnp.dot(_to_bf16(x_ref[...]), we_ref[...],
                         preferred_element_type=jnp.float32) + be_ref[...])
    q_parts = []
    for k in range(n_heads):                         # static unroll, K small
        xk = y[:, k * d:(k + 1) * d].astype(jnp.bfloat16)
        _, qk = _vq_head(xk, cb_ref[k], c2_ref[k])   # tokens skipped entirely
        q_parts.append(qk.astype(jnp.bfloat16))
    q = jnp.concatenate(q_parts, axis=-1)            # [TM, K*D] bf16
    # K*D = 256-deep contraction: fills the 256-wide MXU on v6e/v7x.
    out = jnp.tanh(jnp.dot(q, wdv_ref[...],
                           preferred_element_type=jnp.float32) + bdv_ref[...])
    o_ref[...] = out.astype(o_ref.dtype)


# ----------------------------------------------------------------------------
# Pallas wrappers (grid / BlockSpec plumbing)
# ----------------------------------------------------------------------------
def pallas_linear(x, w_bf16, b_row, activation=None, out_dtype=jnp.float32):
    """y = act(x @ w + b); x [M, Kin], w bf16 [Kin, N], b f32 [1, N] -> [M, N]."""
    M, Kin = x.shape
    Kin2, N = w_bf16.shape
    assert Kin == Kin2
    TM = _choose_tile(M)
    m_pad = pl.cdiv(M, TM) * TM
    kern = functools.partial(_linear_kernel, activation=activation)
    y = pl.pallas_call(
        kern,
        out_shape=jax.ShapeDtypeStruct((m_pad, N), out_dtype),
        grid=(m_pad // TM,),
        in_specs=[
            pl.BlockSpec((TM, Kin), lambda i: (i, 0)),   # streamed row tiles
            # TODO(synk): single-buffer the grid-invariant operands below
            # (pipeline_mode=pl.Buffered(1)) to halve their VMEM footprint at
            # production sizes (matters most on v7x's 64 MiB VMEM).
            pl.BlockSpec((Kin, N), lambda i: (0, 0)),    # weight resident
            pl.BlockSpec((1, N), lambda i: (0, 0)),      # bias resident
        ],
        out_specs=pl.BlockSpec((TM, N), lambda i: (i, 0)),
        compiler_params=pltpu.CompilerParams(
            dimension_semantics=("parallel",)),          # v7x: shard M over 2 TCs
    )(_pad_rows(x, m_pad), w_bf16, b_row)
    return y[:M]


def pallas_encoder(x, w_bf16, b_row, *, n_heads, d):
    """Frame projection: x [M, F] -> features [K, M, D] (bf16, head-major)."""
    M, F = x.shape
    n_out = n_heads * d
    TM = _choose_tile(M)
    m_pad = pl.cdiv(M, TM) * TM
    kern = functools.partial(_encoder_kernel, n_heads=n_heads, d=d)
    y = pl.pallas_call(
        kern,
        out_shape=jax.ShapeDtypeStruct((n_heads, m_pad, d), jnp.bfloat16),
        grid=(m_pad // TM,),
        in_specs=[
            pl.BlockSpec((TM, F), lambda i: (i, 0)),
            pl.BlockSpec((F, n_out), lambda i: (0, 0)),
            pl.BlockSpec((1, n_out), lambda i: (0, 0)),
        ],
        out_specs=pl.BlockSpec((n_heads, TM, d), lambda i: (0, i, 0)),
        compiler_params=pltpu.CompilerParams(dimension_semantics=("parallel",)),
    )(_pad_rows(x, m_pad), w_bf16, b_row)
    return y[:, :M]


def pallas_vq(feats_kmd, cb_bf16, c2_col, *, want_tokens=True):
    """feats [K, M, D] bf16, codebooks [K, C, D] bf16, c2 [K, C, 1] f32 ->
       (toks [K, M] i32 lane-dense, q [M, K*D] bf16)   if want_tokens
        q [M, K*D] bf16                                 otherwise."""
    K, M, D = feats_kmd.shape
    Kc, C, Dc = cb_bf16.shape
    assert K == Kc and D == Dc
    TM = _choose_tile(M)
    m_pad = pl.cdiv(M, TM) * TM
    kern = functools.partial(_vq_kernel, n_heads=K, d=D, want_tokens=want_tokens)
    in_specs = [
        pl.BlockSpec((K, TM, D), lambda m: (0, m, 0)),   # streamed feature rows
        # TODO(synk): for production codebooks (C >> 128) stream C with a
        # running min/argmin in VMEM scratch instead of the full [C, TM]
        # distance tile, and single-buffer these resident operands.
        pl.BlockSpec((K, C, D), lambda m: (0, 0, 0)),    # codebooks resident
        pl.BlockSpec((K, C, 1), lambda m: (0, 0, 0)),    # code norms resident
    ]
    q_shape = jax.ShapeDtypeStruct((m_pad, K * D), jnp.bfloat16)
    q_spec = pl.BlockSpec((TM, K * D), lambda m: (m, 0))    # lane-dense q slab
    if want_tokens:
        out_shape = (jax.ShapeDtypeStruct((K, m_pad), jnp.int32), q_shape)
        out_specs = (pl.BlockSpec((K, TM), lambda m: (0, m)),  # lane-dense toks
                     q_spec)
    else:
        out_shape, out_specs = q_shape, q_spec
    res = pl.pallas_call(
        kern,
        out_shape=out_shape,
        grid=(m_pad // TM,),
        in_specs=in_specs,
        out_specs=out_specs,
        compiler_params=pltpu.CompilerParams(dimension_semantics=("parallel",)),
    )(_pad_rows(feats_kmd, m_pad, axis=1), cb_bf16, c2_col)
    if want_tokens:
        toks, q = res
        return toks[:, :M], q[:M]
    return res[:M]


def pallas_codec_forward(x, we_bf16, be_row, cb_bf16, c2_col, wdv_bf16, bdv_row,
                         *, n_heads, d, frame):
    """Fused forward: sig frames [M, F] f32 -> reconstructed frames [M, F] f32."""
    M, F = x.shape
    K, C, D = cb_bf16.shape
    n_out = n_heads * d
    TM = _choose_tile(M)
    m_pad = pl.cdiv(M, TM) * TM
    kern = functools.partial(_codec_fwd_kernel, n_heads=n_heads, d=d)
    y = pl.pallas_call(
        kern,
        out_shape=jax.ShapeDtypeStruct((m_pad, frame), jnp.float32),
        grid=(m_pad // TM,),
        in_specs=[
            pl.BlockSpec((TM, F), lambda i: (i, 0)),         # streamed sig frames
            pl.BlockSpec((F, n_out), lambda i: (0, 0)),      # encoder W resident
            pl.BlockSpec((1, n_out), lambda i: (0, 0)),      # encoder b resident
            pl.BlockSpec((K, C, D), lambda i: (0, 0, 0)),    # codebooks resident
            pl.BlockSpec((K, C, 1), lambda i: (0, 0, 0)),    # code norms resident
            pl.BlockSpec((n_out, frame), lambda i: (0, 0)),  # fused decode W
            pl.BlockSpec((1, frame), lambda i: (0, 0)),      # fused decode b
        ],
        out_specs=pl.BlockSpec((TM, frame), lambda i: (i, 0)),
        compiler_params=pltpu.CompilerParams(dimension_semantics=("parallel",)),
    )(_pad_rows(x, m_pad), we_bf16, be_row, cb_bf16, c2_col, wdv_bf16, bdv_row)
    return y[:M]


# ----------------------------------------------------------------------------
# Synthetic sub-modules (deterministic params pre-cast to kernel dtypes)
# ----------------------------------------------------------------------------
class Encoder:
    """Frames the waveform and projects frames to K heads of D-dim features.
    Returns [K, B, N, D] (head axis leading; Codec moves it to last)."""

    def __init__(self, key, frame, d, n_heads):
        k1, k2 = jax.random.split(key)
        self.frame, self.d, self.n_heads = frame, d, n_heads
        self.w = 0.1 * jax.random.normal(k1, (frame, n_heads * d), jnp.float32)
        self.b = 0.1 * jax.random.normal(k2, (n_heads * d,), jnp.float32)
        self.w_bf16 = self.w.astype(jnp.bfloat16)          # pre-cast once
        self.b_row = self.b.reshape(1, -1).astype(jnp.float32)

    def __call__(self, sig, length=None):
        B, T = sig.shape
        assert T % self.frame == 0, "T must be a multiple of the frame size"
        N = T // self.frame
        x = sig.reshape(B * N, self.frame)
        y = pallas_encoder(x, self.w_bf16, self.b_row,
                           n_heads=self.n_heads, d=self.d)
        return y.reshape(self.n_heads, B, N, self.d)        # [K, B, N, D]


class Quantizer:
    """Per-head VQ: (tokens [B, N, K] int32, quantized feats [B, N, K, D] bf16)."""

    def __init__(self, key, n_heads, n_codes, d):
        self.n_heads, self.n_codes, self.d = n_heads, n_codes, d
        self.codebooks = jax.random.normal(key, (n_heads, n_codes, d), jnp.float32)
        self.cb_bf16 = self.codebooks.astype(jnp.bfloat16)
        # ||c||^2 from the *same* bf16-cast codebooks used in the distance dot
        # and the reconstruction, so the argmin is self-consistent.
        self.c2_col = jnp.sum(self.cb_bf16.astype(jnp.float32) ** 2,
                              axis=-1, keepdims=True)        # [K, C, 1] f32

    def __call__(self, feats, want_tokens=True):
        if jnp.issubdtype(feats.dtype, jnp.integer):
            return self._lookup(feats)                       # toks_to_qfeats path
        B, N, D, K = feats.shape
        assert D == self.d and K == self.n_heads
        # Undo the wrapper's movedim(0, -1); under jit this transpose cancels
        # exactly against it (no HBM layout copy).
        x = jnp.transpose(feats, (3, 0, 1, 2)).reshape(K, B * N, D)
        if want_tokens:
            toks_km, q = pallas_vq(x, self.cb_bf16, self.c2_col, want_tokens=True)
            toks = jnp.moveaxis(toks_km.reshape(K, B, N), 0, -1)   # [B, N, K]
            return toks, q.reshape(B, N, K, D)
        q = pallas_vq(x, self.cb_bf16, self.c2_col, want_tokens=False)
        return None, q.reshape(B, N, K, D)

    def _lookup(self, toks):
        # toks [B, N, K] integer code indices -> qfeats [B, N, K, D] bf16.
        # TODO(synk): tiny gather kept in XLA; not worth a Pallas kernel.
        B, N, K = toks.shape
        q = jnp.stack(
            [jnp.take(self.cb_bf16[k], toks[..., k], axis=0) for k in range(K)],
            axis=2)
        return toks, q


class Dequantizer:
    """Linear mix of the K quantized heads back into one D-dim feature stream."""

    def __init__(self, key, d, n_heads):
        k1, k2 = jax.random.split(key)
        self.d, self.n_heads = d, n_heads
        self.w = 0.1 * jax.random.normal(k1, (n_heads * d, d), jnp.float32)
        self.b = 0.1 * jax.random.normal(k2, (d,), jnp.float32)
        self.w_bf16 = self.w.astype(jnp.bfloat16)
        self.b_row = self.b.reshape(1, -1).astype(jnp.float32)

    def __call__(self, qfeats, length=None):
        B, N, K, D = qfeats.shape
        x = qfeats.reshape(B * N, K * D)
        y = pallas_linear(x, self.w_bf16, self.b_row, out_dtype=jnp.bfloat16)
        return y.reshape(B, N, D)


class Vocoder:
    """Projects features back to waveform frames and unframes them."""

    def __init__(self, key, d, frame):
        k1, k2 = jax.random.split(key)
        self.frame, self.d = frame, d
        self.w = 0.1 * jax.random.normal(k1, (d, frame), jnp.float32)
        self.b = 0.1 * jax.random.normal(k2, (frame,), jnp.float32)
        self.w_bf16 = self.w.astype(jnp.bfloat16)
        self.b_row = self.b.reshape(1, -1).astype(jnp.float32)

    def __call__(self, feats):
        B, N, D = feats.shape
        x = feats.reshape(B * N, D)
        y = pallas_linear(x, self.w_bf16, self.b_row, activation="tanh",
                          out_dtype=jnp.float32)
        return y.reshape(B, N * self.frame)                  # [B, T]


# ----------------------------------------------------------------------------
# Codec: faithful port of the PyTorch wrapper's forward semantics
# ----------------------------------------------------------------------------
class Codec:
    def __init__(self, encoder=None, quantizer=None, dequantizer=None,
                 vocoder=None, freeze=False):
        self.encoder = encoder
        self.quantizer = quantizer
        self.dequantizer = dequantizer
        self.vocoder = vocoder
        self.freeze = freeze
        # TODO(synk): requires_grad_/eval freezing has no effect on a JAX
        # forward pass (no autograd state here); the attribute is kept as-is.

        # The synthetic dequantizer is a pure linear layer, so its GEMM folds
        # exactly into the vocoder GEMM (f32 composition, one bf16 cast):
        #   tanh((q @ Wd + bd) @ Wv + bv) == tanh(q @ (Wd@Wv) + (bd@Wv + bv))
        # Small bf16 drift vs the two-GEMM path is expected (validated below).
        self._dec_w = None
        self._dec_b = None
        if isinstance(dequantizer, Dequantizer) and isinstance(vocoder, Vocoder):
            self._dec_w = (dequantizer.w @ vocoder.w).astype(jnp.bfloat16)
            self._dec_b = (dequantizer.b @ vocoder.w
                           + vocoder.b).reshape(1, -1).astype(jnp.float32)
        # Full per-tile fusion of the forward pass (encoder -> VQ -> decode)
        # is possible whenever all sub-modules are the synthetic ones above:
        # every weight / codebook is small enough to stay VMEM-resident.
        self._can_fuse_forward = (
            self._dec_w is not None
            and isinstance(encoder, Encoder)
            and isinstance(quantizer, Quantizer))

    # -- forward ------------------------------------------------------------
    def forward(self, sig, length=None):
        if self._can_fuse_forward:
            return self._fused_forward(sig)      # no intermediate HBM traffic
        feats = self.sig_to_feats(sig, length)
        qfeats = self.feats_to_qfeats(feats)
        if self._dec_w is not None:
            return self._fused_decode(qfeats)
        rec_feats = self.qfeats_to_feats(qfeats, length)
        return self.feats_to_sig(rec_feats)

    def _fused_forward(self, sig):
        enc, q, voc = self.encoder, self.quantizer, self.vocoder
        B, T = sig.shape
        assert T % enc.frame == 0
        N = T // enc.frame
        x = sig.reshape(B * N, enc.frame)
        y = pallas_codec_forward(
            x, enc.w_bf16, enc.b_row, q.cb_bf16, q.c2_col,
            self._dec_w, self._dec_b,
            n_heads=enc.n_heads, d=enc.d, frame=voc.frame)
        return y.reshape(B, T)

    def _fused_decode(self, qfeats):
        B, N, K, D = qfeats.shape
        x = qfeats.reshape(B * N, K * D)
        y = pallas_linear(x, self._dec_w, self._dec_b, activation="tanh",
                          out_dtype=jnp.float32)
        return y.reshape(B, N * self.vocoder.frame)

    # -- spec methods ---------------------------------------------------------
    def sig_to_feats(self, sig, length=None):
        if self.encoder is None:
            raise NotImplementedError
        feats = self.encoder(sig, length)
        return jnp.moveaxis(feats, 0, -1)          # movedim(0, -1)

    def feats_to_sig(self, feats):
        if self.vocoder is None:
            raise NotImplementedError
        return self.vocoder(feats)

    def feats_to_toks(self, feats):
        if self.quantizer is None:
            raise NotImplementedError
        toks, _ = self.quantizer(feats)
        return toks

    def feats_to_qfeats(self, feats):
        if self.quantizer is None:
            raise NotImplementedError
        _, qfeats = self.quantizer(feats)
        return qfeats

    def qfeats_to_feats(self, qfeats, length=None):
        if self.dequantizer is None:
            raise NotImplementedError
        return self.dequantizer(qfeats, length)

    def toks_to_qfeats(self, toks):
        if self.quantizer is None:
            raise NotImplementedError
        _, qfeats = self.quantizer(toks)
        return qfeats


if __name__ == "__main__":
    # Small but lane-aligned shapes: FRAME = D = 128 so contractions and
    # stored slabs are multiples of the 128-lane width.  M = B*N = 256 rows;
    # _choose_tile keeps tiles 128-aligned, so this runs as two 128-row grid
    # steps (exercising the pipelined/parallel path).  At production M the
    # same code uses 512-row tiles.
    B = 4
    FRAME = 128
    N_FRAMES = 64
    T = FRAME * N_FRAMES          # 8192 samples
    D = 128                       # hidden dim
    K_HEADS = 2                   # codebook heads
    N_CODES = 128                 # codes per codebook

    root = jax.random.PRNGKey(0)
    k_sig, k_enc, k_q, k_dq, k_voc = jax.random.split(root, 5)

    codec = Codec(
        encoder=Encoder(k_enc, FRAME, D, K_HEADS),
        quantizer=Quantizer(k_q, K_HEADS, N_CODES, D),
        dequantizer=Dequantizer(k_dq, D, K_HEADS),
        vocoder=Vocoder(k_voc, D, FRAME),
        freeze=False,
    )

    sig = jax.random.normal(k_sig, (B, T), jnp.float32)
    length = jnp.ones((B,), jnp.float32)

    # Hot path: fully fused per-tile forward (one pallas_call).
    rec_sig = jax.jit(codec.forward)(sig, length)
    rec_sig = jax.block_until_ready(rec_sig)
    assert rec_sig.shape == (B, T), rec_sig.shape
    assert rec_sig.dtype == jnp.float32
    assert bool(jnp.all(jnp.isfinite(rec_sig)))

    # Staged reference (encoder -> VQ -> dequantizer -> vocoder as separate
    # Pallas kernels) to validate the fused path numerically (bf16 GEMMs and
    # the f32-composed fused decode weight -> loose tolerance).
    feats = codec.sig_to_feats(sig, length)
    qfeats = codec.feats_to_qfeats(feats)
    rec_feats = codec.qfeats_to_feats(qfeats, length)
    rec_ref = jax.block_until_ready(codec.feats_to_sig(rec_feats))
    assert rec_ref.shape == (B, T)
    assert bool(jnp.max(jnp.abs(rec_ref - rec_sig)) < 1e-1)

    # Token path (lane-dense [K, M] kernel output) and token -> qfeats lookup.
    toks = jax.block_until_ready(codec.feats_to_toks(feats))
    assert toks.shape == (B, N_FRAMES, K_HEADS)
    assert toks.dtype == jnp.int32
    q_from_toks = jax.block_until_ready(codec.toks_to_qfeats(toks))
    assert q_from_toks.shape == (B, N_FRAMES, K_HEADS, D)
    assert bool(jnp.max(jnp.abs(q_from_toks.astype(jnp.float32)
                                - qfeats.astype(jnp.float32))) < 1e-5)

    # Token-free VQ variant (skips the token output stream entirely).
    _, q_nt = codec.quantizer(feats, want_tokens=False)
    q_nt = jax.block_until_ready(q_nt)
    assert bool(jnp.max(jnp.abs(q_nt.astype(jnp.float32)
                                - qfeats.astype(jnp.float32))) < 1e-5)

    print("KERNEL_OK")
</pallas_src>

<mosaic_0001>
module attributes {stable_mosaic.version = 11 : i64} {
  func.func @_codec_fwd_kernel(%arg0: i32, %arg1: memref<128x128xf32, #tpu.memory_space<vmem>>, %arg2: memref<128x256xbf16, #tpu.memory_space<vmem>>, %arg3: memref<1x256xf32, #tpu.memory_space<vmem>>, %arg4: memref<2x128x128xbf16, #tpu.memory_space<vmem>>, %arg5: memref<2x128x1xf32, #tpu.memory_space<vmem>>, %arg6: memref<256x128xbf16, #tpu.memory_space<vmem>>, %arg7: memref<1x128xf32, #tpu.memory_space<vmem>>, %arg8: memref<128x128xf32, #tpu.memory_space<vmem>>) attributes {dimension_semantics = [#tpu.dimension_semantics<parallel>], iteration_bounds = array<i64: 2>, scalar_prefetch = 0 : i64, scratch_operands = 0 : i64, tpu.core_type = #tpu.core_type<tc>, window_params = [{transform_indices = @transform_0, window_bounds = array<i64: 128, 128>}, {pipeline_mode = #tpu.pipeline_mode<synchronous>, transform_indices = @transform_1, window_bounds = array<i64: 128, 256>}, {pipeline_mode = #tpu.pipeline_mode<synchronous>, transform_indices = @transform_2, window_bounds = array<i64: 1, 256>}, {pipeline_mode = #tpu.pipeline_mode<synchronous>, transform_indices = @transform_3, window_bounds = array<i64: 2, 128, 128>}, {pipeline_mode = #tpu.pipeline_mode<synchronous>, transform_indices = @transform_4, window_bounds = array<i64: 2, 128, 1>}, {pipeline_mode = #tpu.pipeline_mode<synchronous>, transform_indices = @transform_5, window_bounds = array<i64: 256, 128>}, {pipeline_mode = #tpu.pipeline_mode<synchronous>, transform_indices = @transform_6, window_bounds = array<i64: 1, 128>}, {transform_indices = @transform_7, window_bounds = array<i64: 128, 128>}]} {
    %c0 = arith.constant 0 : index
    %c0_0 = arith.constant 0 : index
    %0 = vector.load %arg1[%c0, %c0_0] : memref<128x128xf32, #tpu.memory_space<vmem>>, vector<128x128xf32>
    %1 = arith.truncf %0 : vector<128x128xf32> to vector<128x128xbf16>
    %c0_1 = arith.constant 0 : index
    %c0_2 = arith.constant 0 : index
    %2 = vector.load %arg2[%c0_1, %c0_2] : memref<128x256xbf16, #tpu.memory_space<vmem>>, vector<128x256xbf16>
    %cst = arith.constant dense<0.000000e+00> : vector<128x256xf32>
    %3 = tpu.matmul %1, %2, %cst {dimension_numbers = #tpu.dot_dimension_numbers<[1], [0], [0], [1], [0, 0, 1, 1], [], []>} : vector<128x128xbf16>, vector<128x256xbf16>, vector<128x256xf32> -> vector<128x256xf32>
    %c0_3 = arith.constant 0 : index
    %c0_4 = arith.constant 0 : index
    %4 = vector.load %arg3[%c0_3, %c0_4] : memref<1x256xf32, #tpu.memory_space<vmem>>, vector<1x256xf32>
    %5 = vector.broadcast %4 : vector<1x256xf32> to vector<128x256xf32>
    %6 = arith.addf %3, %5 : vector<128x256xf32>
    %7 = math.tanh %6 : vector<128x256xf32>
    %8 = vector.extract_strided_slice %7 {offsets = [0, 0], sizes = [128, 128], strides = [1, 1]} : vector<128x256xf32> to vector<128x128xf32>
    %9 = arith.truncf %8 : vector<128x128xf32> to vector<128x128xbf16>
    %c0_5 = arith.constant 0 : index
    %c0_6 = arith.constant 0 : index
    %c0_7 = arith.constant 0 : index
    %10 = vector.load %arg4[%c0_5, %c0_6, %c0_7] : memref<2x128x128xbf16, #tpu.memory_space<vmem>>, vector<1x128x128xbf16>
    %11 = vector.shape_cast %10 : vector<1x128x128xbf16> to vector<128x128xbf16>
    %c0_8 = arith.constant 0 : index
    %c0_9 = arith.constant 0 : index
    %c0_10 = arith.constant 0 : index
    %12 = vector.load %arg5[%c0_8, %c0_9, %c0_10] : memref<2x128x1xf32, #tpu.memory_space<vmem>>, vector<1x128x1xf32>
    %13 = vector.shape_cast %12 : vector<1x128x1xf32> to vector<128x1xf32>
    %cst_11 = arith.constant dense<0.000000e+00> : vector<128x128xf32>
    %14 = tpu.matmul %11, %9, %cst_11 {dimension_numbers = #tpu.dot_dimension_numbers<[1], [1], [0], [0], [0, 0, 1, 0], [], []>} : vector<128x128xbf16>, vector<128x128xbf16>, vector<128x128xf32> -> vector<128x128xf32>
    %cst_12 = arith.constant 2.000000e+00 : f32
    %15 = vector.broadcast %cst_12 : f32 to vector<128x128xf32>
    %16 = arith.mulf %15, %14 : vector<128x128xf32>
    %17 = vector.broadcast %13 : vector<128x1xf32> to vector<128x128xf32>
    %18 = arith.subf %17, %16 : vector<128x128xf32>
    %cst_13 = arith.constant dense<0x7F800000> : vector<128xf32>
    %19 = vector.multi_reduction <minimumf>, %18, %cst_13 [0] : vector<128x128xf32> to vector<128xf32>
    %20 = vector.shape_cast %19 : vector<128xf32> to vector<1x128xf32>
    %21 = tpu.iota {dimensions = array<i32: 0>} : vector<128x128xi32>
    %22 = vector.broadcast %20 : vector<1x128xf32> to vector<128x128xf32>
    %23 = arith.cmpf ole, %18, %22 : vector<128x128xf32>
    %c128_i32 = arith.constant 128 : i32
    %24 = vector.broadcast %c128_i32 : i32 to vector<128x128xi32>
    %25 = arith.select %23, %21, %24 : vector<128x128xi1>, vector<128x128xi32>
    %cst_14 = arith.constant dense<2147483647> : vector<128xi32>
    %26 = vector.multi_reduction <minsi>, %25, %cst_14 [0] : vector<128x128xi32> to vector<128xi32>
    %27 = vector.shape_cast %26 : vector<128xi32> to vector<1x128xi32>
    %28 = vector.broadcast %27 : vector<1x128xi32> to vector<128x128xi32>
    %29 = arith.cmpi eq, %21, %28 : vector<128x128xi32>
    %30 = arith.extui %29 : vector<128x128xi1> to vector<128x128xi32>
    %31 = arith.sitofp %30 : vector<128x128xi32> to vector<128x128xf32>
    %32 = arith.truncf %31 : vector<128x128xf32> to vector<128x128xbf16>
    %cst_15 = arith.constant dense<0.000000e+00> : vector<128x128xf32>
    %33 = tpu.matmul %32, %11, %cst_15 {dimension_numbers = #tpu.dot_dimension_numbers<[0], [0], [1], [1], [0, 1, 1, 1], [], []>} : vector<128x128xbf16>, vector<128x128xbf16>, vector<128x128xf32> -> vector<128x128xf32>
    %34 = arith.truncf %33 : vector<128x128xf32> to vector<128x128xbf16>
    %35 = vector.extract_strided_slice %7 {offsets = [0, 128], sizes = [128, 128], strides = [1, 1]} : vector<128x256xf32> to vector<128x128xf32>
    %36 = arith.truncf %35 : vector<128x128xf32> to vector<128x128xbf16>
    %c1 = arith.constant 1 : index
    %c0_16 = arith.constant 0 : index
    %c0_17 = arith.constant 0 : index
    %37 = vector.load %arg4[%c1, %c0_16, %c0_17] : memref<2x128x128xbf16, #tpu.memory_space<vmem>>, vector<1x128x128xbf16>
    %38 = vector.shape_cast %37 : vector<1x128x128xbf16> to vector<128x128xbf16>
    %c1_18 = arith.constant 1 : index
    %c0_19 = arith.constant 0 : index
    %c0_20 = arith.constant 0 : index
    %39 = vector.load %arg5[%c1_18, %c0_19, %c0_20] : memref<2x128x1xf32, #tpu.memory_space<vmem>>, vector<1x128x1xf32>
    %40 = vector.shape_cast %39 : vector<1x128x1xf32> to vector<128x1xf32>
    %cst_21 = arith.constant dense<0.000000e+00> : vector<128x128xf32>
    %41 = tpu.matmul %38, %36, %cst_21 {dimension_numbers = #tpu.dot_dimension_numbers<[1], [1], [0], [0], [0, 0, 1, 0], [], []>} : vector<128x128xbf16>, vector<128x128xbf16>, vector<128x128xf32> -> vector<128x128xf32>
    %cst_22 = arith.constant 2.000000e+00 : f32
    %42 = vector.broadcast %cst_22 : f32 to vector<128x128xf32>
    %43 = arith.mulf %42, %41 : vector<128x128xf32>
    %44 = vector.broadcast %40 : vector<128x1xf32> to vector<128x128xf32>
    %45 = arith.subf %44, %43 : vector<128x128xf32>
    %cst_23 = arith.constant dense<0x7F800000> : vector<128xf32>
    %46 = vector.multi_reduction <minimumf>, %45, %cst_23 [0] : vector<128x128xf32> to vector<128xf32>
    %47 = vector.shape_cast %46 : vector<128xf32> to vector<1x128xf32>
    %48 = tpu.iota {dimensions = array<i32: 0>} : vector<128x128xi32>
    %49 = vector.broadcast %47 : vector<1x128xf32> to vector<128x128xf32>
    %50 = arith.cmpf ole, %45, %49 : vector<128x128xf32>
    %c128_i32_24 = arith.constant 128 : i32
    %51 = vector.broadcast %c128_i32_24 : i32 to vector<128x128xi32>
    %52 = arith.select %50, %48, %51 : vector<128x128xi1>, vector<128x128xi32>
    %cst_25 = arith.constant dense<2147483647> : vector<128xi32>
    %53 = vector.multi_reduction <minsi>, %52, %cst_25 [0] : vector<128x128xi32> to vector<128xi32>
    %54 = vector.shape_cast %53 : vector<128xi32> to vector<1x128xi32>
    %55 = vector.broadcast %54 : vector<1x128xi32> to vector<128x128xi32>
    %56 = arith.cmpi eq, %48, %55 : vector<128x128xi32>
    %57 = arith.extui %56 : vector<128x128xi1> to vector<128x128xi32>
    %58 = arith.sitofp %57 : vector<128x128xi32> to vector<128x128xf32>
    %59 = arith.truncf %58 : vector<128x128xf32> to vector<128x128xbf16>
    %cst_26 = arith.constant dense<0.000000e+00> : vector<128x128xf32>
    %60 = tpu.matmul %59, %38, %cst_26 {dimension_numbers = #tpu.dot_dimension_numbers<[0], [0], [1], [1], [0, 1, 1, 1], [], []>} : vector<128x128xbf16>, vector<128x128xbf16>, vector<128x128xf32> -> vector<128x128xf32>
    %61 = arith.truncf %60 : vector<128x128xf32> to vector<128x128xbf16>
    %62 = tpu.concatenate %34, %61 in 1 : vector<128x128xbf16>, vector<128x128xbf16> -> vector<128x256xbf16>
    %c0_27 = arith.constant 0 : index
    %c0_28 = arith.constant 0 : index
    %63 = vector.load %arg6[%c0_27, %c0_28] : memref<256x128xbf16, #tpu.memory_space<vmem>>, vector<256x128xbf16>
    %cst_29 = arith.constant dense<0.000000e+00> : vector<128x128xf32>
    %64 = tpu.matmul %62, %63, %cst_29 {dimension_numbers = #tpu.dot_dimension_numbers<[1], [0], [0], [1], [0, 0, 1, 1], [], []>} : vector<128x256xbf16>, vector<256x128xbf16>, vector<128x128xf32> -> vector<128x128xf32>
    %c0_30 = arith.constant 0 : index
    %c0_31 = arith.constant 0 : index
    %65 = vector.load %arg7[%c0_30, %c0_31] : memref<1x128xf32, #tpu.memory_space<vmem>>, vector<1x128xf32>
    %66 = vector.broadcast %65 : vector<1x128xf32> to vector<128x128xf32>
    %67 = arith.addf %64, %66 : vector<128x128xf32>
    %68 = math.tanh %67 : vector<128x128xf32>
    %c0_32 = arith.constant 0 : index
    %c0_33 = arith.constant 0 : index
    %69 = vector.load %arg8[%c0_32, %c0_33] : memref<128x128xf32, #tpu.memory_space<vmem>>, vector<128x128xf32>
    tpu.vector_store %arg8[%c0_32, %c0_33], %68 {strides = array<i32>} : memref<128x128xf32, #tpu.memory_space<vmem>>, vector<128x128xf32>,
    return
  }
  func.func @transform_0(%arg0: i32) -> (i32, i32) {
    %c0_i32 = arith.constant 0 : i32
    %c0_i32_0 = arith.constant 0 : i32
    return %arg0, %c0_i32 : i32, i32
  }
  func.func @transform_1(%arg0: i32) -> (i32, i32) {
    %c0_i32 = arith.constant 0 : i32
    %c0_i32_0 = arith.constant 0 : i32
    %c0_i32_1 = arith.constant 0 : i32
    return %c0_i32, %c0_i32_0 : i32, i32
  }
  func.func @transform_2(%arg0: i32) -> (i32, i32) {
    %c0_i32 = arith.constant 0 : i32
    %c0_i32_0 = arith.constant 0 : i32
    %c0_i32_1 = arith.constant 0 : i32
    return %c0_i32, %c0_i32_0 : i32, i32
  }
  func.func @transform_3(%arg0: i32) -> (i32, i32, i32) {
    %c0_i32 = arith.constant 0 : i32
    %c0_i32_0 = arith.constant 0 : i32
    %c0_i32_1 = arith.constant 0 : i32
    %c0_i32_2 = arith.constant 0 : i32
    return %c0_i32, %c0_i32_0, %c0_i32_1 : i32, i32, i32
  }
  func.func @transform_4(%arg0: i32) -> (i32, i32, i32) {
    %c0_i32 = arith.constant 0 : i32
    %c0_i32_0 = arith.constant 0 : i32
    %c0_i32_1 = arith.constant 0 : i32
    %c0_i32_2 = arith.constant 0 : i32
    return %c0_i32, %c0_i32_0, %c0_i32_1 : i32, i32, i32
  }
  func.func @transform_5(%arg0: i32) -> (i32, i32) {
    %c0_i32 = arith.constant 0 : i32
    %c0_i32_0 = arith.constant 0 : i32
    %c0_i32_1 = arith.constant 0 : i32
    return %c0_i32, %c0_i32_0 : i32, i32
  }
  func.func @transform_6(%arg0: i32) -> (i32, i32) {
    %c0_i32 = arith.constant 0 : i32
    %c0_i32_0 = arith.constant 0 : i32
    %c0_i32_1 = arith.constant 0 : i32
    return %c0_i32, %c0_i32_0 : i32, i32
  }
  func.func @transform_7(%arg0: i32) -> (i32, i32) {
    %c0_i32 = arith.constant 0 : i32
    %c0_i32_0 = arith.constant 0 : i32
    return %arg0, %c0_i32 : i32, i32
  }
}

</mosaic_0001>

<llo_original>
// kernel: forward.1
$region0: #{forward.1}
  #allocation0 [shape = 'u32[]', space=smem, size = 0x4, offset = 0x4, fixed_abs, tag = 'smem constant byte address 0x4 - core index']
  #allocation1 [shape = 'u32[144,128]{1,0:T(1,128)}', space=vmem, size = 0x12000, scoped, tag = 'internal scratch']
  %s0 = inlined_call_operand.vmem [shape: f32[256,128], index: 0, kind: input, shape index: {}]
  %s1 = inlined_call_operand.vmem [shape: bf16[128,256], index: 1, kind: input, shape index: {}]
  %s2 = inlined_call_operand.vmem [shape: f32[1,256], index: 2, kind: input, shape index: {}]
  %s3 = inlined_call_operand.vmem [shape: bf16[2,128,128], index: 3, kind: input, shape index: {}]
  %s4 = inlined_call_operand.vmem [shape: f32[2,128,1], index: 4, kind: input, shape index: {}]
  %s5 = inlined_call_operand.vmem [shape: bf16[256,128], index: 5, kind: input, shape index: {}]
  %s6 = inlined_call_operand.vmem [shape: f32[1,128], index: 6, kind: input, shape index: {}]
  %s7 = inlined_call_operand.vmem [shape: f32[256,128], index: 7, kind: output, shape index: {}]
  %s8 = sld [smem:[#allocation0]]
  $region61: #{forward.1} parent=0
    _
  %s10 = ssub.s32 1, %s8
  %s11 = scalar_select 0, %s10, %s8
  loop: start=0, step=1, limit=4
  $region2: #{forward.1} parent=0 // loop_pre_header
    _
  $region3: #{forward.1} parent=0 // loop_header
    %s13 = sphi 0, %s17
    %p14 = scmp.ge.s32.totalorder %s13, 4
    %s23 = sphi 0, %s25
    %s26 = sphi 0, %s23
    %s27 = sphi 0, %s26
    %s43 = sphi 0, %s27
    %s47 = sphi 0, %s47
    %s49 = sphi 0, %s47
    %s50 = sphi 0, %s49
    %s64 = sphi 0, %s50
    %s68 = sphi 0, %s68
    %s70 = sphi 0, %s68
    %s71 = sphi 0, %s70
    %s85 = sphi 0, %s71
    %s89 = sphi 0, %s89
    %s91 = sphi 0, %s89
    %s92 = sphi 0, %s91
    %s106 = sphi 0, %s92
    %s110 = sphi 0, %s110
    %s112 = sphi 0, %s110
    %s113 = sphi 0, %s112
    %s127 = sphi 0, %s113
    %s131 = sphi 0, %s131
    %s133 = sphi 0, %s131
    %s134 = sphi 0, %s133
    %s148 = sphi 0, %s134
    %s152 = sphi 0, %s152
    %s154 = sphi 0, %s152
    %s155 = sphi 0, %s154
    %s169 = sphi 0, %s155
    %s175 = sphi 0, %s177
    %s178 = sphi 0, %s175
    %s179 = sphi 0, %s178
    %s195 = sphi 0, %s179
  $region4: #{forward.1} parent=0 // loop_header_branch
    %16 = sbr.rel (%p14) target = $region8
  $region5: #{forward.1} parent=0 // loop_body
    %s18 = ssub.s32 %s13, 1
    %s19 = ssub.s32 %s13, 2
    %s20 = sadd.s32 %s13, 1
    %s21 = ssub.s32 %s13, %s20
    %p22 = scmp.eq.s32.totalorder %s21, 0
    %s24 = sadd.s32 %s23, 1
    %s25 = scalar_select %p22, %s23, %s24
    %p28 = pneg %p22
    %p29 = scmp.eq.s32.totalorder %s13, 1
    %p30 = por %p28, %p29
    %p31 = scmp.ne.s32.totalorder %s23, %s26
    %p32 = scmp.eq.s32.totalorder %s13, 0
    %p33 = por %p31, %p32
    %p34 = scmp.ne.s32.totalorder %s23, %s26
    %p35 = scmp.eq.s32.totalorder %s18, 1
    %p36 = por %p34, %p35
    %p37 = scmp.ne.s32.totalorder %s26, %s27
    %p38 = scmp.eq.s32.totalorder %s18, 0
    %p39 = por %p37, %p38
    %p40 = scmp.ne.s32.totalorder %s26, %s27
    %p41 = scmp.eq.s32.totalorder %s19, 1
    %p42 = por %p40, %p41
    %p44 = scmp.ne.s32.totalorder %s27, %s43
    %p45 = scmp.eq.s32.totalorder %s19, 0
    %p46 = por %p44, %p45
    %s48 = sadd.s32 %s47, 1
    %p51 = scmp.eq.s32.totalorder %s13, 1
    %p52 = scmp.ne.s32.totalorder %s47, %s49
    %p53 = scmp.eq.s32.totalorder %s13, 0
    %p54 = por %p52, %p53
    %p55 = scmp.ne.s32.totalorder %s47, %s49
    %p56 = scmp.eq.s32.totalorder %s18, 1
    %p57 = por %p55, %p56
    %p58 = scmp.ne.s32.totalorder %s49, %s50
    %p59 = scmp.eq.s32.totalorder %s18, 0
    %p60 = por %p58, %p59
    %p61 = scmp.ne.s32.totalorder %s49, %s50
    %p62 = scmp.eq.s32.totalorder %s19, 1
    %p63 = por %p61, %p62
    %p65 = scmp.ne.s32.totalorder %s50, %s64
    %p66 = scmp.eq.s32.totalorder %s19, 0
    %p67 = por %p65, %p66
    %s69 = sadd.s32 %s68, 1
    %p72 = scmp.eq.s32.totalorder %s13, 1
    %p73 = scmp.ne.s32.totalorder %s68, %s70
    %p74 = scmp.eq.s32.totalorder %s13, 0
    %p75 = por %p73, %p74
    %p76 = scmp.ne.s32.totalorder %s68, %s70
    %p77 = scmp.eq.s32.totalorder %s18, 1
    %p78 = por %p76, %p77
    %p79 = scmp.ne.s32.totalorder %s70, %s71
    %p80 = scmp.eq.s32.totalorder %s18, 0
    %p81 = por %p79, %p80
    %p82 = scmp.ne.s32.totalorder %s70, %s71
    %p83 = scmp.eq.s32.totalorder %s19, 1
    %p84 = por %p82, %p83
    %p86 = scmp.ne.s32.totalorder %s71, %s85
    %p87 = scmp.eq.s32.totalorder %s19, 0
    %p88 = por %p86, %p87
    %s90 = sadd.s32 %s89, 1
    %p93 = scmp.eq.s32.totalorder %s13, 1
    %p94 = scmp.ne.s32.totalorder %s89, %s91
    %p95 = scmp.eq.s32.totalorder %s13, 0
    %p96 = por %p94, %p95
    %p97 = scmp.ne.s32.totalorder %s89, %s91
    %p98 = scmp.eq.s32.totalorder %s18, 1
    %p99 = por %p97, %p98
    %p100 = scmp.ne.s32.totalorder %s91, %s92
    %p101 = scmp.eq.s32.totalorder %s18, 0
    %p102 = por %p100, %p101
    %p103 = scmp.ne.s32.totalorder %s91, %s92
    %p104 = scmp.eq.s32.totalorder %s19, 1
    %p105 = por %p103, %p104
    %p107 = scmp.ne.s32.totalorder %s92, %s106
    %p108 = scmp.eq.s32.totalorder %s19, 0
    %p109 = por %p107, %p108
    %s111 = sadd.s32 %s110, 1
    %p114 = scmp.eq.s32.totalorder %s13, 1
    %p115 = scmp.ne.s32.totalorder %s110, %s112
    %p116 = scmp.eq.s32.totalorder %s13, 0
    %p117 = por %p115, %p116
    %p118 = scmp.ne.s32.totalorder %s110, %s112
    %p119 = scmp.eq.s32.totalorder %s18, 1
    %p120 = por %p118, %p119
    %p121 = scmp.ne.s32.totalorder %s112, %s113
    %p122 = scmp.eq.s32.totalorder %s18, 0
    %p123 = por %p121, %p122
    %p124 = scmp.ne.s32.totalorder %s112, %s113
    %p125 = scmp.eq.s32.totalorder %s19, 1
    %p126 = por %p124, %p125
    %p128 = scmp.ne.s32.totalorder %s113, %s127
    %p129 = scmp.eq.s32.totalorder %s19, 0
    %p130 = por %p128, %p129
    %s132 = sadd.s32 %s131, 1
    %p135 = scmp.eq.s32.totalorder %s13, 1
    %p136 = scmp.ne.s32.totalorder %s131, %s133
    %p137 = scmp.eq.s32.totalorder %s13, 0
    %p138 = por %p136, %p137
    %p139 = scmp.ne.s32.totalorder %s131, %s133
    %p140 = scmp.eq.s32.totalorder %s18, 1
    %p141 = por %p139, %p140
    %p142 = scmp.ne.s32.totalorder %s133, %s134
    %p143 = scmp.eq.s32.totalorder %s18, 0
    %p144 = por %p142, %p143
    %p145 = scmp.ne.s32.totalorder %s133, %s134
    %p146 = scmp.eq.s32.totalorder %s19, 1
    %p147 = por %p145, %p146
    %p149 = scmp.ne.s32.totalorder %s134, %s148
    %p150 = scmp.eq.s32.totalorder %s19, 0
    %p151 = por %p149, %p150
    %s153 = sadd.s32 %s152, 1
    %p156 = scmp.eq.s32.totalorder %s13, 1
    %p157 = scmp.ne.s32.totalorder %s152, %s154
    %p158 = scmp.eq.s32.totalorder %s13, 0
    %p159 = por %p157, %p158
    %p160 = scmp.ne.s32.totalorder %s152, %s154
    %p161 = scmp.eq.s32.totalorder %s18, 1
    %p162 = por %p160, %p161
    %p163 = scmp.ne.s32.totalorder %s154, %s155
    %p164 = scmp.eq.s32.totalorder %s18, 0
    %p165 = por %p163, %p164
    %p166 = scmp.ne.s32.totalorder %s154, %s155
    %p167 = scmp.eq.s32.totalorder %s19, 1
    %p168 = por %p166, %p167
    %p170 = scmp.ne.s32.totalorder %s155, %s169
    %p171 = scmp.eq.s32.totalorder %s19, 0
    %p172 = por %p170, %p171
    %s173 = ssub.s32 %s13, %s20
    %p174 = scmp.eq.s32.totalorder %s173, 0
    %s176 = sadd.s32 %s175, 1
    %s177 = scalar_select %p174, %s175, %s176
    %p180 = pneg %p174
    %p181 = scmp.eq.s32.totalorder %s13, 1
    %p182 = por %p180, %p181
    %p183 = scmp.ne.s32.totalorder %s175, %s178
    %p184 = scmp.eq.s32.totalorder %s13, 0
    %p185 = por %p183, %p184
    %p186 = scmp.ne.s32.totalorder %s175, %s178
    %p187 = scmp.eq.s32.totalorder %s18, 1
    %p188 = por %p186, %p187
    %p189 = scmp.ne.s32.totalorder %s178, %s179
    %p190 = scmp.eq.s32.totalorder %s18, 0
    %p191 = por %p189, %p190
    %p192 = scmp.ne.s32.totalorder %s178, %s179
    %p193 = scmp.eq.s32.totalorder %s19, 1
    %p194 = por %p192, %p193
    %p196 = scmp.ne.s32.totalorder %s179, %s195
    %p197 = scmp.eq.s32.totalorder %s19, 0
    %p198 = por %p196, %p197
    %p199 = scmp.le.s32.totalorder 1, %s13
    %p200 = scmp.lt.s32.totalorder %s13, 3
    %p201 = pnand %p199, %p200
    %p202 = pneg %p201
    // Predicated region
    $region9: #{forward.1} parent=5 // pred_check
      _
    $region10: #{forward.1} parent=5 // pred_check_branch
      %204 = sbr.rel (%p201) target = $region12
    $region11: #{forward.1} parent=5 // pred_region
      %s205 = ssub.s32 %s13, 1
      // Predicated region
      $region13: #{forward.1} parent=11 // pred_check
        %p206 = pneg %p60
      $region14: #{forward.1} parent=11 // pred_check_branch
        %208 = sbr.rel (%p206) target = $region16
      $region15: #{forward.1} parent=11 // pred_region
        _
      $region16: #{forward.1} parent=11 // pred_fallthru
        _
      // Predicated region
      $region17: #{forward.1} parent=11 // pred_check
        %p209 = pneg %p81
      $region18: #{forward.1} parent=11 // pred_check_branch
        %211 = sbr.rel (%p209) target = $region20
      $region19: #{forward.1} parent=11 // pred_region
        _
      $region20: #{forward.1} parent=11 // pred_fallthru
        _
      // Predicated region
      $region21: #{forward.1} parent=11 // pred_check
        %p212 = pneg %p102
      $region22: #{forward.1} parent=11 // pred_check_branch
        %214 = sbr.rel (%p212) target = $region24
      $region23: #{forward.1} parent=11 // pred_region
        _
      $region24: #{forward.1} parent=11 // pred_fallthru
        _
      // Predicated region
      $region25: #{forward.1} parent=11 // pred_check
        %p215 = pneg %p123
      $region26: #{forward.1} parent=11 // pred_check_branch
        %217 = sbr.rel (%p215) target = $region28
      $region27: #{forward.1} parent=11 // pred_region
        _
      $region28: #{forward.1} parent=11 // pred_fallthru
        _
      // Predicated region
      $region29: #{forward.1} parent=11 // pred_check
        %p218 = pneg %p144
      $region30: #{forward.1} parent=11 // pred_check_branch
        %220 = sbr.rel (%p218) target = $region32
      $region31: #{forward.1} parent=11 // pred_region
        _
      $region32: #{forward.1} parent=11 // pred_fallthru
        _
      // Predicated region
      $region33: #{forward.1} parent=11 // pred_check
        %p221 = pneg %p165
      $region34: #{forward.1} parent=11 // pred_check_branch
        %223 = sbr.rel (%p221) target = $region36
      $region35: #{forward.1} parent=11 // pred_region
        _
      $region36: #{forward.1} parent=11 // pred_fallthru
        _
    $region12: #{forward.1} parent=5 // pred_fallthru
      _
    %p224 = scmp.lt.s32.totalorder %s13, 2
    // Predicated region
    $region37: #{forward.1} parent=5 // pred_check
      %p225 = pneg %p224
    $region38: #{forward.1} parent=5 // pred_check_branch
      %227 = sbr.rel (%p225) target = $region40
    $region39: #{forward.1} parent=5 // pred_region
      // Predicated region
      $region41: #{forward.1} parent=39 // pred_check
        %p228 = pneg %p33
      $region42: #{forward.1} parent=39 // pred_check_branch
        %230 = sbr.rel (%p228) target = $region44
      $region43: #{forward.1} parent=39 // pred_region
        %s231 = smul.u32 16, %s13
        %p232 = scmp.lt.s32.totalorder %s231, 31
        %s233 = scalar_select %p232, %s231, 31
        %s234 = smul.addr %s233, 8
        %s235 = scalar_lea.vmem %s0, %s234
        %s236 = smul.u32 16, %s13
      $region44: #{forward.1} parent=39 // pred_fallthru
        _
    $region40: #{forward.1} parent=5 // pred_fallthru
      _
    %p237 = scmp.le.s32.totalorder 1, %s13
    %p238 = scmp.lt.s32.totalorder %s13, 3
    %p239 = pnand %p237, %p238
    %p240 = pneg %p239
    // Predicated region
    $region45: #{forward.1} parent=5 // pred_check
      _
    $region46: #{forward.1} parent=5 // pred_check_branch
      %242 = sbr.rel (%p239) target = $region48
    $region47: #{forward.1} parent=5 // pred_region
      %s243 = ssub.s32 %s13, 1
      %s244 = smul.u32 16, %s18
      %p245 = scmp.lt.s32.totalorder %s244, 31
      %s246 = scalar_select %p245, %s244, 31
      %s247 = smul.addr %s246, 8
      %s248 = scalar_lea.vmem %s0, %s247
      %p249 = pneg %p39
      %p250 = pneg %p36
      %p251 = pneg %p60
      %p252 = pneg %p57
      %p253 = pneg %p81
      %p254 = pneg %p78
      %p255 = pneg %p102
      %p256 = pneg %p99
      %p257 = pneg %p123
      %p258 = pneg %p120
      %p259 = pneg %p144
      %p260 = pneg %p141
      %p261 = pneg %p165
      %p262 = pneg %p162
      %p263 = pneg %p191
      %p264 = pneg %p188
      %s265 = smul.u32 16, %s18
      %p266 = scmp.lt.s32.totalorder %s265, 31
      %s267 = scalar_select %p266, %s265, 31
      %s268 = smul.addr %s267, 8
      %s269 = scalar_lea.vmem %s7, %s268
      %s270 = smul.u32 16, %s18
      %p271 = scmp.lt.s32.totalorder %s270, 31
      %s272 = scalar_select %p271, %s270, 31
      %s273 = smul.addr %s272, 8
      %s274 = scalar_lea.vmem %s0, %s273
      %s275 = smul.u32 16, %s18
      %s276 = smul.u32 16, %s18
      %p277 = scmp.lt.s32.totalorder %s276, 31
      %s278 = scalar_select %p277, %s276, 31
      %s279 = smul.addr %s278, 8
      %s280 = scalar_lea.vmem %s7, %s279
      %s281 = smul.u32 16, %s18
      %v283 = vld [vmem:[%s274] sm:$0xff]
      %v284 = vld [vmem:[%s274 + $0x8] sm:$0xff]
      %v285 = vld [vmem:[%s274 + $0x10] sm:$0xff]
      %v286 = vld [vmem:[%s274 + $0x18] sm:$0xff]
      %v287 = vld [vmem:[%s274 + $0x20] sm:$0xff]
      %v288 = vld [vmem:[%s274 + $0x28] sm:$0xff]
      %v289 = vld [vmem:[%s274 + $0x30] sm:$0xff]
      %v290 = vld [vmem:[%s274 + $0x38] sm:$0xff]
      %v291 = vld [vmem:[%s274 + $0x40] sm:$0xff]
      %v292 = vld [vmem:[%s274 + $0x48] sm:$0xff]
      %v293 = vld [vmem:[%s274 + $0x50] sm:$0xff]
      %v294 = vld [vmem:[%s274 + $0x58] sm:$0xff]
      %v295 = vld [vmem:[%s274 + $0x60] sm:$0xff]
      %v296 = vld [vmem:[%s274 + $0x68] sm:$0xff]
      %v297 = vld [vmem:[%s274 + $0x70] sm:$0xff]
      %v298 = vld [vmem:[%s274 + $0x78] sm:$0xff]
      %v299 = vpack.c.bf16 %v284, %v283
      %v300 = vpack.c.bf16 %v286, %v285
      %v301 = vpack.c.bf16 %v288, %v287
      %v302 = vpack.c.bf16 %v290, %v289
      %v303 = vpack.c.bf16 %v292, %v291
      %v304 = vpack.c.bf16 %v294, %v293
      %v305 = vpack.c.bf16 %v296, %v295
      %v306 = vpack.c.bf16 %v298, %v297
      %v307 = vld [vmem:[%s1] sm:$0xff]
      %v308 = vld [vmem:[%s1 + $0x8] sm:$0xff]
      %v309 = vld [vmem:[%s1 + $0x10] sm:$0xff]
      %v310 = vld [vmem:[%s1 + $0x18] sm:$0xff]
      %v311 = vld [vmem:[%s1 + $0x20] sm:$0xff]
      %v312 = vld [vmem:[%s1 + $0x28] sm:$0xff]
      %v313 = vld [vmem:[%s1 + $0x30] sm:$0xff]
      %v314 = vld [vmem:[%s1 + $0x38] sm:$0xff]
      %v315 = vld [vmem:[%s1 + $0x40] sm:$0xff]
      %v316 = vld [vmem:[%s1 + $0x48] sm:$0xff]
      %v317 = vld [vmem:[%s1 + $0x50] sm:$0xff]
      %v318 = vld [vmem:[%s1 + $0x58] sm:$0xff]
      %v319 = vld [vmem:[%s1 + $0x60] sm:$0xff]
      %v320 = vld [vmem:[%s1 + $0x68] sm:$0xff]
      %v321 = vld [vmem:[%s1 + $0x70] sm:$0xff]
      %v322 = vld [vmem:[%s1 + $0x78] sm:$0xff]
      %v323 = vld [vmem:[%s2] sm:$0x3]
      %v325 = vlaneseq
      %v326 = vshrl.u32 %v325, 7
      %v327 = vsub.s32 0, %v326
      %v328 = vrot.slane %v323, %v327
      %v329 = vlaneseq
      %v330 = vshrl.u32 %v329, 7
      %v331 = vsub.s32 1, %v330
      %v332 = vrot.slane %v323, %v331
      %v351 = vunpack.c.l.b16 %v307
      %v352 = vunpack.c.h.b16 %v307
      %v353 = vunpack.c.l.b16 %v308
      %v354 = vunpack.c.h.b16 %v308
      %v355 = vunpack.c.l.b16 %v309
      %v356 = vunpack.c.h.b16 %v309
      %v357 = vunpack.c.l.b16 %v310
      %v358 = vunpack.c.h.b16 %v310
      %v359 = vunpack.c.l.b16 %v311
      %v360 = vunpack.c.h.b16 %v311
      %v361 = vunpack.c.l.b16 %v312
      %v362 = vunpack.c.h.b16 %v312
      %v363 = vunpack.c.l.b16 %v313
      %v364 = vunpack.c.h.b16 %v313
      %v365 = vunpack.c.l.b16 %v314
      %v366 = vunpack.c.h.b16 %v314
      %v367 = vunpack.c.l.b16 %v315
      %v368 = vunpack.c.h.b16 %v315
      %v369 = vunpack.c.l.b16 %v316
      %v370 = vunpack.c.h.b16 %v316
      %v371 = vunpack.c.l.b16 %v317
      %v372 = vunpack.c.h.b16 %v317
      %v373 = vunpack.c.l.b16 %v318
      %v374 = vunpack.c.h.b16 %v318
      %v375 = vunpack.c.l.b16 %v319
      %v376 = vunpack.c.h.b16 %v319
      %v377 = vunpack.c.l.b16 %v320
      %v378 = vunpack.c.h.b16 %v320
      %v379 = vunpack.c.l.b16 %v321
      %v380 = vunpack.c.h.b16 %v321
      %v381 = vunpack.c.l.b16 %v322
      %v382 = vunpack.c.h.b16 %v322
      %v383 = vpack.c.b16 %v353, %v351
      %v384 = vpack.c.b16 %v354, %v352
      %v385 = vpack.c.b16 %v357, %v355
      %v386 = vpack.c.b16 %v358, %v356
      %v387 = vpack.c.b16 %v361, %v359
      %v388 = vpack.c.b16 %v362, %v360
      %v389 = vpack.c.b16 %v365, %v363
      %v390 = vpack.c.b16 %v366, %v364
      %v391 = vpack.c.b16 %v369, %v367
      %v392 = vpack.c.b16 %v370, %v368
      %v393 = vpack.c.b16 %v373, %v371
      %v394 = vpack.c.b16 %v374, %v372
      %v395 = vpack.c.b16 %v377, %v375
      %v396 = vpack.c.b16 %v378, %v376
      %v397 = vpack.c.b16 %v381, %v379
      %v398 = vpack.c.b16 %v382, %v380
      %415 = vmatprep.subr.bf16.mxu0 %v384
      %416 = vmatpush1.bf16.msra.mxu0 %v383
      %417 = vmatprep.subr.bf16.mxu0 %v386
      %418 = vmatpush1.bf16.msra.mxu0 %v385
      %419 = vmatprep.subr.bf16.mxu0 %v388
      %420 = vmatpush1.bf16.msra.mxu0 %v387
      %421 = vmatprep.subr.bf16.mxu0 %v390
      %422 = vmatpush1.bf16.msra.mxu0 %v389
      %423 = vmatprep.subr.bf16.mxu0 %v392
      %424 = vmatpush1.bf16.msra.mxu0 %v391
      %425 = vmatprep.subr.bf16.mxu0 %v394
      %426 = vmatpush1.bf16.msra.mxu0 %v393
      %427 = vmatprep.subr.bf16.mxu0 %v396
      %428 = vmatpush1.bf16.msra.mxu0 %v395
      %429 = vmatprep.subr.bf16.mxu0 %v398
      %430 = vmatpush1.bf16.msra.mxu0 %v397
      %431 = vmatprep.subr.bf16.mxu0 0
      %432 = vmatpush1.bf16.msra.mxu0 0
      %433 = vmatprep.subr.bf16.mxu0 0
      %434 = vmatpush1.bf16.msra.mxu0 0
      %435 = vmatprep.subr.bf16.mxu0 0
      %436 = vmatpush1.bf16.msra.mxu0 0
      %437 = vmatprep.subr.bf16.mxu0 0
      %438 = vmatpush1.bf16.msra.mxu0 0
      %439 = vmatprep.subr.bf16.mxu0 0
      %440 = vmatpush1.bf16.msra.mxu0 0
      %441 = vmatprep.subr.bf16.mxu0 0
      %442 = vmatpush1.bf16.msra.mxu0 0
      %443 = vmatprep.subr.bf16.mxu0 0
      %444 = vmatpush1.bf16.msra.mxu0 0
      %445 = vmatprep.subr.bf16.mxu0 0
      %446 = vmatpush1.bf16.msra.mxu0 0
      %447 = vmatprep.mubr.bf16.mxu0 0
      %448 = vmatmul.mubr.bf16.gmra.mrb[0].mxu0 %v299
      %v449 = vpop.f32.mrb[0].mxu0
      %v450 = vadd.f32 %v328, %v449
      %v451 = vpop.f32.mrb[0].mxu0
      %v452 = vadd.f32 %v332, %v451
      %v453 = vpop.f32.mrb[0].mxu0
      %v454 = vadd.f32 %v328, %v453
      %v455 = vpop.f32.mrb[0].mxu0
      %v456 = vadd.f32 %v332, %v455
      %457 = vmatprep.mubr.bf16.mxu0 0
      %458 = vmatmul.mubr.bf16.gmra.mrb[0].mxu0 %v300
      %v459 = vpop.f32.mrb[0].mxu0
      %v460 = vadd.f32 %v328, %v459
      %v461 = vpop.f32.mrb[0].mxu0
      %v462 = vadd.f32 %v332, %v461
      %v463 = vpop.f32.mrb[0].mxu0
      %v464 = vadd.f32 %v328, %v463
      %v465 = vpop.f32.mrb[0].mxu0
      %v466 = vadd.f32 %v332, %v465
      %467 = vmatprep.mubr.bf16.mxu0 0
      %468 = vmatmul.mubr.bf16.gmra.mrb[0].mxu0 %v301
      %v469 = vpop.f32.mrb[0].mxu0
      %v470 = vadd.f32 %v328, %v469
      %v471 = vpop.f32.mrb[0].mxu0
      %v472 = vadd.f32 %v332, %v471
      %v473 = vpop.f32.mrb[0].mxu0
      %v474 = vadd.f32 %v328, %v473
      %v475 = vpop.f32.mrb[0].mxu0
      %v476 = vadd.f32 %v332, %v475
      %477 = vmatprep.mubr.bf16.mxu0 0
      %478 = vmatmul.mubr.bf16.gmra.mrb[0].mxu0 %v302
      %v479 = vpop.f32.mrb[0].mxu0
      %v480 = vadd.f32 %v328, %v479
      %v481 = vpop.f32.mrb[0].mxu0
      %v482 = vadd.f32 %v332, %v481
      %v483 = vpop.f32.mrb[0].mxu0
      %v484 = vadd.f32 %v328, %v483
      %v485 = vpop.f32.mrb[0].mxu0
      %v486 = vadd.f32 %v332, %v485
      %487 = vmatprep.mubr.bf16.mxu0 0
      %488 = vmatmul.mubr.bf16.gmra.mrb[0].mxu0 %v303
      %v489 = vpop.f32.mrb[0].mxu0
      %v490 = vadd.f32 %v328, %v489
      %v491 = vpop.f32.mrb[0].mxu0
      %v492 = vadd.f32 %v332, %v491
      %v493 = vpop.f32.mrb[0].mxu0
      %v494 = vadd.f32 %v328, %v493
      %v495 = vpop.f32.mrb[0].mxu0
      %v496 = vadd.f32 %v332, %v495
      %497 = vmatprep.mubr.bf16.mxu0 0
      %498 = vmatmul.mubr.bf16.gmra.mrb[0].mxu0 %v304
      %v499 = vpop.f32.mrb[0].mxu0
      %v500 = vadd.f32 %v328, %v499
      %v501 = vpop.f32.mrb[0].mxu0
      %v502 = vadd.f32 %v332, %v501
      %v503 = vpop.f32.mrb[0].mxu0
      %v504 = vadd.f32 %v328, %v503
      %v505 = vpop.f32.mrb[0].mxu0
      %v506 = vadd.f32 %v332, %v505
      %507 = vmatprep.mubr.bf16.mxu0 0
      %508 = vmatmul.mubr.bf16.gmra.mrb[0].mxu0 %v305
      %v509 = vpop.f32.mrb[0].mxu0
      %v510 = vadd.f32 %v328, %v509
      %v511 = vpop.f32.mrb[0].mxu0
      %v512 = vadd.f32 %v332, %v511
      %v513 = vpop.f32.mrb[0].mxu0
      %v514 = vadd.f32 %v328, %v513
      %v515 = vpop.f32.mrb[0].mxu0
      %v516 = vadd.f32 %v332, %v515
      %517 = vmatprep.mubr.bf16.mxu0 0
      %518 = vmatmul.mubr.bf16.gmra.mrb[0].mxu0 %v306
      %v519 = vpop.f32.mrb[0].mxu0
      %v520 = vadd.f32 %v328, %v519
      %v521 = vpop.f32.mrb[0].mxu0
      %v522 = vadd.f32 %v332, %v521
      %v523 = vpop.f32.mrb[0].mxu0
      %v524 = vadd.f32 %v328, %v523
      %v525 = vpop.f32.mrb[0].mxu0
      %v526 = vadd.f32 %v332, %v525
      %527 = vdwg.mxu0
      %v528 = vtanh.pop %v450
      %v529 = vtanh.pop %v452
      %v530 = vtanh.pop %v454
      %v531 = vtanh.pop %v456
      %v532 = vtanh.pop %v460
      %v533 = vtanh.pop %v462
      %v534 = vtanh.pop %v464
      %v535 = vtanh.pop %v466
      %v536 = vtanh.pop %v470
      %v537 = vtanh.pop %v472
      %v538 = vtanh.pop %v474
      %v539 = vtanh.pop %v476
      %v540 = vtanh.pop %v480
      %v541 = vtanh.pop %v482
      %v542 = vtanh.pop %v484
      %v543 = vtanh.pop %v486
      %v544 = vtanh.pop %v490
      %v545 = vtanh.pop %v492
      %v546 = vtanh.pop %v494
      %v547 = vtanh.pop %v496
      %v548 = vtanh.pop %v500
      %v549 = vtanh.pop %v502
      %v550 = vtanh.pop %v504
      %v551 = vtanh.pop %v506
      %v552 = vtanh.pop %v510
      %v553 = vtanh.pop %v512
      %v554 = vtanh.pop %v514
      %v555 = vtanh.pop %v516
      %v556 = vtanh.pop %v520
      %v557 = vtanh.pop %v522
      %v558 = vtanh.pop %v524
      %v559 = vtanh.pop %v526
      %v560 = vpack.c.bf16 %v530, %v528
      %v561 = vpack.c.bf16 %v534, %v532
      %v562 = vpack.c.bf16 %v538, %v536
      %v563 = vpack.c.bf16 %v542, %v540
      %v564 = vpack.c.bf16 %v546, %v544
      %v565 = vpack.c.bf16 %v550, %v548
      %v566 = vpack.c.bf16 %v554, %v552
      %v567 = vpack.c.bf16 %v558, %v556
      %v568 = vld [vmem:[%s3] sm:$0xf]
      %v569 = vld [vmem:[%s3 + $0x4] sm:$0xf]
      %v570 = vld [vmem:[%s3 + $0x8] sm:$0xf]
      %v571 = vld [vmem:[%s3 + $0xc] sm:$0xf]
      %v572 = vld [vmem:[%s3 + $0x10] sm:$0xf]
      %v573 = vld [vmem:[%s3 + $0x14] sm:$0xf]
      %v574 = vld [vmem:[%s3 + $0x18] sm:$0xf]
      %v575 = vld [vmem:[%s3 + $0x1c] sm:$0xf]
      %v576 = vld [vmem:[%s3 + $0x20] sm:$0xf]
      %v577 = vld [vmem:[%s3 + $0x24] sm:$0xf]
      %v578 = vld [vmem:[%s3 + $0x28] sm:$0xf]
      %v579 = vld [vmem:[%s3 + $0x2c] sm:$0xf]
      %v580 = vld [vmem:[%s3 + $0x30] sm:$0xf]
      %v581 = vld [vmem:[%s3 + $0x34] sm:$0xf]
      %v582 = vld [vmem:[%s3 + $0x38] sm:$0xf]
      %v583 = vld [vmem:[%s3 + $0x3c] sm:$0xf]
      %v584 = vld [vmem:[%s4] sm:$0xff]
      %v585 = vld [vmem:[%s4 + $0x8] sm:$0xff]
      %v586 = vld [vmem:[%s4 + $0x10] sm:$0xff]
      %v587 = vld [vmem:[%s4 + $0x18] sm:$0xff]
      %v588 = vld [vmem:[%s4 + $0x20] sm:$0xff]
      %v589 = vld [vmem:[%s4 + $0x28] sm:$0xff]
      %v590 = vld [vmem:[%s4 + $0x30] sm:$0xff]
      %v591 = vld [vmem:[%s4 + $0x38] sm:$0xff]
      %v592 = vld [vmem:[%s4 + $0x40] sm:$0xff]
      %v593 = vld [vmem:[%s4 + $0x48] sm:$0xff]
      %v594 = vld [vmem:[%s4 + $0x50] sm:$0xff]
      %v595 = vld [vmem:[%s4 + $0x58] sm:$0xff]
      %v596 = vld [vmem:[%s4 + $0x60] sm:$0xff]
      %v597 = vld [vmem:[%s4 + $0x68] sm:$0xff]
      %v598 = vld [vmem:[%s4 + $0x70] sm:$0xff]
      %v599 = vld [vmem:[%s4 + $0x78] sm:$0xff]
      %v616 = vunpack.c.l.b16 %v568
      %v617 = vunpack.c.l.b16 %v569
      %v618 = vunpack.c.l.b16 %v570
      %v619 = vunpack.c.l.b16 %v571
      %v620 = vunpack.c.l.b16 %v572
      %v621 = vunpack.c.l.b16 %v573
      %v622 = vunpack.c.l.b16 %v574
      %v623 = vunpack.c.l.b16 %v575
      %v624 = vunpack.c.l.b16 %v576
      %v625 = vunpack.c.l.b16 %v577
      %v626 = vunpack.c.l.b16 %v578
      %v627 = vunpack.c.l.b16 %v579
      %v628 = vunpack.c.l.b16 %v580
      %v629 = vunpack.c.l.b16 %v581
      %v630 = vunpack.c.l.b16 %v582
      %v631 = vunpack.c.l.b16 %v583
      %v632 = vpack.c.b16 %v617, %v616
      %v633 = vpack.c.b16 %v619, %v618
      %v634 = vpack.c.b16 %v621, %v620
      %v635 = vpack.c.b16 %v623, %v622
      %v636 = vpack.c.b16 %v625, %v624
      %v637 = vpack.c.b16 %v627, %v626
      %v638 = vpack.c.b16 %v629, %v628
      %v639 = vpack.c.b16 %v631, %v630
      %648 = vmatprep.subr.bf16.mxu0 0
      %649 = vmatpush1.bf16.xpose.msra.mxu0 %v560
      %650 = vmatprep.subr.bf16.mxu0 0
      %651 = vmatpush1.bf16.xpose.msra.mxu0 %v561
      %652 = vmatprep.subr.bf16.mxu0 0
      %653 = vmatpush1.bf16.xpose.msra.mxu0 %v562
      %654 = vmatprep.subr.bf16.mxu0 0
      %655 = vmatpush1.bf16.xpose.msra.mxu0 %v563
      %656 = vmatprep.subr.bf16.mxu0 0
      %657 = vmatpush1.bf16.xpose.msra.mxu0 %v564
      %658 = vmatprep.subr.bf16.mxu0 0
      %659 = vmatpush1.bf16.xpose.msra.mxu0 %v565
      %660 = vmatprep.subr.bf16.mxu0 0
      %661 = vmatpush1.bf16.xpose.msra.mxu0 %v566
      %662 = vmatprep.subr.bf16.mxu0 0
      %663 = vmatpush1.bf16.xpose.msra.mxu0 %v567
      %664 = vmatprep.subr.bf16.mxu0 0
      %665 = vmatpush1.bf16.xpose.msra.mxu0 0
      %666 = vmatprep.subr.bf16.mxu0 0
      %667 = vmatpush1.bf16.xpose.msra.mxu0 0
      %668 = vmatprep.subr.bf16.mxu0 0
      %669 = vmatpush1.bf16.xpose.msra.mxu0 0
      %670 = vmatprep.subr.bf16.mxu0 0
      %671 = vmatpush1.bf16.xpose.msra.mxu0 0
      %672 = vmatprep.subr.bf16.mxu0 0
      %673 = vmatpush1.bf16.xpose.msra.mxu0 0
      %674 = vmatprep.subr.bf16.mxu0 0
      %675 = vmatpush1.bf16.xpose.msra.mxu0 0
      %676 = vmatprep.subr.bf16.mxu0 0
      %677 = vmatpush1.bf16.xpose.msra.mxu0 0
      %678 = vmatprep.subr.bf16.mxu0 0
      %679 = vmatpush1.bf16.xpose.msra.mxu0 0
      %680 = vmatprep.mubr.bf16.mxu0 0
      %681 = vmatmul.mubr.bf16.gmra.mrb[0].mxu0 %v632
      %v682 = vpop.f32.mrb[0].mxu0
      %v683 = vadd.f32 0.0, %v682
      %v684 = vpop.f32.mrb[0].mxu0
      %v685 = vpop.f32.mrb[0].mxu0
      %v686 = vadd.f32 0.0, %v685
      %v687 = vpop.f32.mrb[0].mxu0
      %688 = vmatprep.mubr.bf16.mxu0 0
      %689 = vmatmul.mubr.bf16.gmra.mrb[0].mxu0 %v633
      %v690 = vpop.f32.mrb[0].mxu0
      %v691 = vadd.f32 0.0, %v690
      %v692 = vpop.f32.mrb[0].mxu0
      %v693 = vpop.f32.mrb[0].mxu0
      %v694 = vadd.f32 0.0, %v693
      %v695 = vpop.f32.mrb[0].mxu0
      %696 = vmatprep.mubr.bf16.mxu0 0
      %697 = vmatmul.mubr.bf16.gmra.mrb[0].mxu0 %v634
      %v698 = vpop.f32.mrb[0].mxu0
      %v699 = vadd.f32 0.0, %v698
      %v700 = vpop.f32.mrb[0].mxu0
      %v701 = vpop.f32.mrb[0].mxu0
      %v702 = vadd.f32 0.0, %v701
      %v703 = vpop.f32.mrb[0].mxu0
      %704 = vmatprep.mubr.bf16.mxu0 0
      %705 = vmatmul.mubr.bf16.gmra.mrb[0].mxu0 %v635
      %v706 = vpop.f32.mrb[0].mxu0
      %v707 = vadd.f32 0.0, %v706
      %v708 = vpop.f32.mrb[0].mxu0
      %v709 = vpop.f32.mrb[0].mxu0
      %v710 = vadd.f32 0.0, %v709
      %v711 = vpop.f32.mrb[0].mxu0
      %712 = vmatprep.mubr.bf16.mxu0 0
      %713 = vmatmul.mubr.bf16.gmra.mrb[0].mxu0 %v636
      %v714 = vpop.f32.mrb[0].mxu0
      %v715 = vadd.f32 0.0, %v714
      %v716 = vpop.f32.mrb[0].mxu0
      %v717 = vpop.f32.mrb[0].mxu0
      %v718 = vadd.f32 0.0, %v717
      %v719 = vpop.f32.mrb[0].mxu0
      %720 = vmatprep.mubr.bf16.mxu0 0
      %721 = vmatmul.mubr.bf16.gmra.mrb[0].mxu0 %v637
      %v722 = vpop.f32.mrb[0].mxu0
      %v723 = vadd.f32 0.0, %v722
      %v724 = vpop.f32.mrb[0].mxu0
      %v725 = vpop.f32.mrb[0].mxu0
      %v726 = vadd.f32 0.0, %v725
      %v727 = vpop.f32.mrb[0].mxu0
      %728 = vmatprep.mubr.bf16.mxu0 0
      %729 = vmatmul.mubr.bf16.gmra.mrb[0].mxu0 %v638
      %v730 = vpop.f32.mrb[0].mxu0
      %v731 = vadd.f32 0.0, %v730
      %v732 = vpop.f32.mrb[0].mxu0
      %v733 = vpop.f32.mrb[0].mxu0
      %v734 = vadd.f32 0.0, %v733
      %v735 = vpop.f32.mrb[0].mxu0
      %736 = vmatprep.mubr.bf16.mxu0 0
      %737 = vmatmul.mubr.bf16.gmra.mrb[0].mxu0 %v639
      %v738 = vpop.f32.mrb[0].mxu0
      %v739 = vadd.f32 0.0, %v738
      %v740 = vpop.f32.mrb[0].mxu0
      %v741 = vpop.f32.mrb[0].mxu0
      %v742 = vadd.f32 0.0, %v741
      %v743 = vpop.f32.mrb[0].mxu0
      %744 = vdwg.mxu0
      %v745 = vmul.f32 %v683, 2.0
      %v746 = vmul.f32 %v686, 2.0
      %v747 = vmul.f32 %v691, 2.0
      %v748 = vmul.f32 %v694, 2.0
      %v749 = vmul.f32 %v699, 2.0
      %v750 = vmul.f32 %v702, 2.0
      %v751 = vmul.f32 %v707, 2.0
      %v752 = vmul.f32 %v710, 2.0
      %v753 = vmul.f32 %v715, 2.0
      %v754 = vmul.f32 %v718, 2.0
      %v755 = vmul.f32 %v723, 2.0
      %v756 = vmul.f32 %v726, 2.0
      %v757 = vmul.f32 %v731, 2.0
      %v758 = vmul.f32 %v734, 2.0
      %v759 = vmul.f32 %v739, 2.0
      %v760 = vmul.f32 %v742, 2.0
      %762 = vset.pattern.permute.xlu0 0
      %763 = vperm.xlu0 %762, %v584
      %v764 = vpop.permute.xlu0 %763
      %767 = vset.pattern.permute.xlu0 0
      %768 = vperm.xlu0 %767, %v585
      %v769 = vpop.permute.xlu0 %768
      %772 = vset.pattern.permute.xlu0 0
      %773 = vperm.xlu0 %772, %v586
      %v774 = vpop.permute.xlu0 %773
      %777 = vset.pattern.permute.xlu0 0
      %778 = vperm.xlu0 %777, %v587
      %v779 = vpop.permute.xlu0 %778
      %782 = vset.pattern.permute.xlu0 0
      %783 = vperm.xlu0 %782, %v588
      %v784 = vpop.permute.xlu0 %783
      %787 = vset.pattern.permute.xlu0 0
      %788 = vperm.xlu0 %787, %v589
      %v789 = vpop.permute.xlu0 %788
      %792 = vset.pattern.permute.xlu0 0
      %793 = vperm.xlu0 %792, %v590
      %v794 = vpop.permute.xlu0 %793
      %797 = vset.pattern.permute.xlu0 0
      %798 = vperm.xlu0 %797, %v591
      %v799 = vpop.permute.xlu0 %798
      %802 = vset.pattern.permute.xlu0 0
      %803 = vperm.xlu0 %802, %v592
      %v804 = vpop.permute.xlu0 %803
      %807 = vset.pattern.permute.xlu0 0
      %808 = vperm.xlu0 %807, %v593
      %v809 = vpop.permute.xlu0 %808
      %812 = vset.pattern.permute.xlu0 0
      %813 = vperm.xlu0 %812, %v594
      %v814 = vpop.permute.xlu0 %813
      %817 = vset.pattern.permute.xlu0 0
      %818 = vperm.xlu0 %817, %v595
      %v819 = vpop.permute.xlu0 %818
      %822 = vset.pattern.permute.xlu0 0
      %823 = vperm.xlu0 %822, %v596
      %v824 = vpop.permute.xlu0 %823
      %827 = vset.pattern.permute.xlu0 0
      %828 = vperm.xlu0 %827, %v597
      %v829 = vpop.permute.xlu0 %828
      %832 = vset.pattern.permute.xlu0 0
      %833 = vperm.xlu0 %832, %v598
      %v834 = vpop.permute.xlu0 %833
      %837 = vset.pattern.permute.xlu0 0
      %838 = vperm.xlu0 %837, %v599
      %v839 = vpop.permute.xlu0 %838
      %v841 = vsub.f32 %v764, %v745
      %v842 = vsub.f32 %v769, %v746
      %v843 = vsub.f32 %v774, %v747
      %v844 = vsub.f32 %v779, %v748
      %v845 = vsub.f32 %v784, %v749
      %v846 = vsub.f32 %v789, %v750
      %v847 = vsub.f32 %v794, %v751
      %v848 = vsub.f32 %v799, %v752
      %v849 = vsub.f32 %v804, %v753
      %v850 = vsub.f32 %v809, %v754
      %v851 = vsub.f32 %v814, %v755
      %v852 = vsub.f32 %v819, %v756
      %v853 = vsub.f32 %v824, %v757
      %v854 = vsub.f32 %v829, %v758
      %v855 = vsub.f32 %v834, %v759
      %v856 = vsub.f32 %v839, %v760
      %v857 = vmin.f32 %v841, %v845
      %v858 = vmin.f32 %v842, %v846
      %v859 = vmin.f32 %v843, %v847
      %v860 = vmin.f32 %v844, %v848
      %v861 = vmin.f32 %v857, %v849
      %v862 = vmin.f32 %v858, %v850
      %v863 = vmin.f32 %v859, %v851
      %v864 = vmin.f32 %v860, %v852
      %v865 = vmin.f32 %v861, %v853
      %v866 = vmin.f32 %v862, %v854
      %v867 = vmin.f32 %v863, %v855
      %v868 = vmin.f32 %v864, %v856
      %v869 = vmin.f32 %v865, %v866
      %v870 = vmin.f32 %v867, %v868
      %v871 = vmin.f32 %v869, %v870
      %v872 = vrot.slane %v871, 4
      %v873 = vmin.f32 %v871, %v872
      %v874 = vrot.slane %v873, 2
      %v875 = vmin.f32 %v873, %v874
      %v876 = vrot.slane %v875, 1
      %v877 = vmin.f32 %v875, %v876
      %v878 = vlaneseq
      %v879 = vshrl.u32 %v878, 7
      %v880 = vadd.s32 %v879, 8
      %v881 = vadd.s32 %v879, 16
      %v882 = vadd.s32 %v879, 24
      %v883 = vadd.s32 %v879, 32
      %v884 = vadd.s32 %v879, 40
      %v885 = vadd.s32 %v879, 48
      %v886 = vadd.s32 %v879, 56
      %v887 = vadd.s32 %v879, 64
      %v888 = vadd.s32 %v879, 72
      %v889 = vadd.s32 %v879, 80
      %v890 = vadd.s32 %v879, 88
      %v891 = vadd.s32 %v879, 96
      %v892 = vadd.s32 %v879, 104
      %v893 = vadd.s32 %v879, 112
      %v894 = vadd.s32 %v879, 120
      %vm895 = vcmp.le.f32.partialorder %v841, %v877
      %vm896 = vcmp.le.f32.partialorder %v842, %v877
      %vm897 = vcmp.le.f32.partialorder %v843, %v877
      %vm898 = vcmp.le.f32.partialorder %v844, %v877
      %vm899 = vcmp.le.f32.partialorder %v845, %v877
      %vm900 = vcmp.le.f32.partialorder %v846, %v877
      %vm901 = vcmp.le.f32.partialorder %v847, %v877
      %vm902 = vcmp.le.f32.partialorder %v848, %v877
      %vm903 = vcmp.le.f32.partialorder %v849, %v877
      %vm904 = vcmp.le.f32.partialorder %v850, %v877
      %vm905 = vcmp.le.f32.partialorder %v851, %v877
      %vm906 = vcmp.le.f32.partialorder %v852, %v877
      %vm907 = vcmp.le.f32.partialorder %v853, %v877
      %vm908 = vcmp.le.f32.partialorder %v854, %v877
      %vm909 = vcmp.le.f32.partialorder %v855, %v877
      %vm910 = vcmp.le.f32.partialorder %v856, %v877
      %v911 = vsel %vm895, %v879, 128
      %v912 = vsel %vm896, %v880, 128
      %v913 = vsel %vm897, %v881, 128
      %v914 = vsel %vm898, %v882, 128
      %v915 = vsel %vm899, %v883, 128
      %v916 = vsel %vm900, %v884, 128
      %v917 = vsel %vm901, %v885, 128
      %v918 = vsel %vm902, %v886, 128
      %v919 = vsel %vm903, %v887, 128
      %v920 = vsel %vm904, %v888, 128
      %v921 = vsel %vm905, %v889, 128
      %v922 = vsel %vm906, %v890, 128
      %v923 = vsel %vm907, %v891, 128
      %v924 = vsel %vm908, %v892, 128
      %v925 = vsel %vm909, %v893, 128
      %v926 = vsel %vm910, %v894, 128
      %vm927 = vcmp.lt.s32.totalorder %v911, %v915
      %v928 = vsel %vm927, %v911, %v915
      %vm929 = vcmp.lt.s32.totalorder %v912, %v916
      %v930 = vsel %vm929, %v912, %v916
      %vm931 = vcmp.lt.s32.totalorder %v913, %v917
      %v932 = vsel %vm931, %v913, %v917
      %vm933 = vcmp.lt.s32.totalorder %v914, %v918
      %v934 = vsel %vm933, %v914, %v918
      %vm935 = vcmp.lt.s32.totalorder %v928, %v919
      %v936 = vsel %vm935, %v928, %v919
      %vm937 = vcmp.lt.s32.totalorder %v930, %v920
      %v938 = vsel %vm937, %v930, %v920
      %vm939 = vcmp.lt.s32.totalorder %v932, %v921
      %v940 = vsel %vm939, %v932, %v921
      %vm941 = vcmp.lt.s32.totalorder %v934, %v922
      %v942 = vsel %vm941, %v934, %v922
      %vm943 = vcmp.lt.s32.totalorder %v936, %v923
      %v944 = vsel %vm943, %v936, %v923
      %vm945 = vcmp.lt.s32.totalorder %v938, %v924
      %v946 = vsel %vm945, %v938, %v924
      %vm947 = vcmp.lt.s32.totalorder %v940, %v925
      %v948 = vsel %vm947, %v940, %v925
      %vm949 = vcmp.lt.s32.totalorder %v942, %v926
      %v950 = vsel %vm949, %v942, %v926
      %vm951 = vcmp.lt.s32.totalorder %v944, %v946
      %v952 = vsel %vm951, %v944, %v946
      %vm953 = vcmp.lt.s32.totalorder %v948, %v950
      %v954 = vsel %vm953, %v948, %v950
      %vm955 = vcmp.lt.s32.totalorder %v952, %v954
      %v956 = vsel %vm955, %v952, %v954
      %v957 = vrot.slane %v956, 4
      %vm958 = vcmp.lt.s32.totalorder %v956, %v957
      %v959 = vsel %vm958, %v956, %v957
      %v960 = vrot.slane %v959, 2
      %vm961 = vcmp.lt.s32.totalorder %v959, %v960
      %v962 = vsel %vm961, %v959, %v960
      %v963 = vrot.slane %v962, 1
      %vm964 = vcmp.lt.s32.totalorder %v962, %v963
      %v965 = vsel %vm964, %v962, %v963
      %vm966 = vcmp.eq.s32.totalorder %v879, %v965
      %vm967 = vcmp.eq.s32.totalorder %v880, %v965
      %vm968 = vcmp.eq.s32.totalorder %v881, %v965
      %vm969 = vcmp.eq.s32.totalorder %v882, %v965
      %vm970 = vcmp.eq.s32.totalorder %v883, %v965
      %vm971 = vcmp.eq.s32.totalorder %v884, %v965
      %vm972 = vcmp.eq.s32.totalorder %v885, %v965
      %vm973 = vcmp.eq.s32.totalorder %v886, %v965
      %vm974 = vcmp.eq.s32.totalorder %v887, %v965
      %vm975 = vcmp.eq.s32.totalorder %v888, %v965
      %vm976 = vcmp.eq.s32.totalorder %v889, %v965
      %vm977 = vcmp.eq.s32.totalorder %v890, %v965
      %vm978 = vcmp.eq.s32.totalorder %v891, %v965
      %vm979 = vcmp.eq.s32.totalorder %v892, %v965
      %vm980 = vcmp.eq.s32.totalorder %v893, %v965
      %vm981 = vcmp.eq.s32.totalorder %v894, %v965
      %v982 = vsel %vm966, 1, 0
      %v983 = vsel %vm967, 1, 0
      %v984 = vsel %vm968, 1, 0
      %v985 = vsel %vm969, 1, 0
      %v986 = vsel %vm970, 1, 0
      %v987 = vsel %vm971, 1, 0
      %v988 = vsel %vm972, 1, 0
      %v989 = vsel %vm973, 1, 0
      %v990 = vsel %vm974, 1, 0
      %v991 = vsel %vm975, 1, 0
      %v992 = vsel %vm976, 1, 0
      %v993 = vsel %vm977, 1, 0
      %v994 = vsel %vm978, 1, 0
      %v995 = vsel %vm979, 1, 0
      %v996 = vsel %vm980, 1, 0
      %v997 = vsel %vm981, 1, 0
      %v998 = vcvt.s32.f32 %v982
      %v999 = vcvt.s32.f32 %v983
      %v1000 = vcvt.s32.f32 %v984
      %v1001 = vcvt.s32.f32 %v985
      %v1002 = vcvt.s32.f32 %v986
      %v1003 = vcvt.s32.f32 %v987
      %v1004 = vcvt.s32.f32 %v988
      %v1005 = vcvt.s32.f32 %v989
      %v1006 = vcvt.s32.f32 %v990
      %v1007 = vcvt.s32.f32 %v991
      %v1008 = vcvt.s32.f32 %v992
      %v1009 = vcvt.s32.f32 %v993
      %v1010 = vcvt.s32.f32 %v994
      %v1011 = vcvt.s32.f32 %v995
      %v1012 = vcvt.s32.f32 %v996
      %v1013 = vcvt.s32.f32 %v997
      %v1014 = vpack.c.bf16 %v999, %v998
      %v1015 = vpack.c.bf16 %v1001, %v1000
      %v1016 = vpack.c.bf16 %v1003, %v1002
      %v1017 = vpack.c.bf16 %v1005, %v1004
      %v1018 = vpack.c.bf16 %v1007, %v1006
      %v1019 = vpack.c.bf16 %v1009, %v1008
      %v1020 = vpack.c.bf16 %v1011, %v1010
      %v1021 = vpack.c.bf16 %v1013, %v1012
      %1022 = vxpose.xlu0.c.b16.start [1/8] %v1014, 128
      %1023 = vxpose.xlu0.c.b16.cont [2/8] %v1015, 128
      %1024 = vxpose.xlu0.c.b16.cont [3/8] %v1016, 128
      %1025 = vxpose.xlu0.c.b16.cont [4/8] %v1017, 128
      %1026 = vxpose.xlu0.c.b16.cont [5/8] %v1018, 128
      %1027 = vxpose.xlu0.c.b16.cont [6/8] %v1019, 128
      %1028 = vxpose.xlu0.c.b16.cont [7/8] %v1020, 128
      %1029 = vxpose.xlu0.c.b16.end [8/8] %v1021, 128
      %v1030 = vpop.trf.xlu0
      %v1031 = vpop.trf.xlu0
      %v1032 = vpop.trf.xlu0
      %v1033 = vpop.trf.xlu0
      %v1034 = vpop.trf.xlu0
      %v1035 = vpop.trf.xlu0
      %v1036 = vpop.trf.xlu0
      %v1037 = vpop.trf.xlu0
      %1038 = vmatprep.subr.bf16.mxu0 0
      %1039 = vmatpush1.bf16.msra.mxu0 %v632
      %1040 = vmatprep.subr.bf16.mxu0 0
      %1041 = vmatpush1.bf16.msra.mxu0 %v633
      %1042 = vmatprep.subr.bf16.mxu0 0
      %1043 = vmatpush1.bf16.msra.mxu0 %v634
      %1044 = vmatprep.subr.bf16.mxu0 0
      %1045 = vmatpush1.bf16.msra.mxu0 %v635
      %1046 = vmatprep.subr.bf16.mxu0 0
      %1047 = vmatpush1.bf16.msra.mxu0 %v636
      %1048 = vmatprep.subr.bf16.mxu0 0
      %1049 = vmatpush1.bf16.msra.mxu0 %v637
      %1050 = vmatprep.subr.bf16.mxu0 0
      %1051 = vmatpush1.bf16.msra.mxu0 %v638
      %1052 = vmatprep.subr.bf16.mxu0 0
      %1053 = vmatpush1.bf16.msra.mxu0 %v639
      %1054 = vmatprep.subr.bf16.mxu0 0
      %1055 = vmatpush1.bf16.msra.mxu0 0
      %1056 = vmatprep.subr.bf16.mxu0 0
      %1057 = vmatpush1.bf16.msra.mxu0 0
      %1058 = vmatprep.subr.bf16.mxu0 0
      %1059 = vmatpush1.bf16.msra.mxu0 0
      %1060 = vmatprep.subr.bf16.mxu0 0
      %1061 = vmatpush1.bf16.msra.mxu0 0
      %1062 = vmatprep.subr.bf16.mxu0 0
      %1063 = vmatpush1.bf16.msra.mxu0 0
      %1064 = vmatprep.subr.bf16.mxu0 0
      %1065 = vmatpush1.bf16.msra.mxu0 0
      %1066 = vmatprep.subr.bf16.mxu0 0
      %1067 = vmatpush1.bf16.msra.mxu0 0
      %1068 = vmatprep.subr.bf16.mxu0 0
      %1069 = vmatpush1.bf16.msra.mxu0 0
      %1070 = vmatprep.mubr.bf16.mxu0 0
      %1071 = vmatmul.mubr.bf16.gmra.mrb[0].mxu0 %v1030
      %v1072 = vpop.f32.mrb[0].mxu0
      %v1073 = vadd.f32 0.0, %v1072
      %v1074 = vpop.f32.mrb[0].mxu0
      %v1075 = vpop.f32.mrb[0].mxu0
      %v1076 = vadd.f32 0.0, %v1075
      %v1077 = vpop.f32.mrb[0].mxu0
      %1078 = vmatprep.mubr.bf16.mxu0 0
      %1079 = vmatmul.mubr.bf16.gmra.mrb[0].mxu0 %v1031
      %v1080 = vpop.f32.mrb[0].mxu0
      %v1081 = vadd.f32 0.0, %v1080
      %v1082 = vpop.f32.mrb[0].mxu0
      %v1083 = vpop.f32.mrb[0].mxu0
      %v1084 = vadd.f32 0.0, %v1083
      %v1085 = vpop.f32.mrb[0].mxu0
      %1086 = vmatprep.mubr.bf16.mxu0 0
      %1087 = vmatmul.mubr.bf16.gmra.mrb[0].mxu0 %v1032
      %v1088 = vpop.f32.mrb[0].mxu0
      %v1089 = vadd.f32 0.0, %v1088
      %v1090 = vpop.f32.mrb[0].mxu0
      %v1091 = vpop.f32.mrb[0].mxu0
      %v1092 = vadd.f32 0.0, %v1091
      %v1093 = vpop.f32.mrb[0].mxu0
      %1094 = vmatprep.mubr.bf16.mxu0 0
      %1095 = vmatmul.mubr.bf16.gmra.mrb[0].mxu0 %v1033
      %v1096 = vpop.f32.mrb[0].mxu0
      %v1097 = vadd.f32 0.0, %v1096
      %v1098 = vpop.f32.mrb[0].mxu0
      %v1099 = vpop.f32.mrb[0].mxu0
      %v1100 = vadd.f32 0.0, %v1099
      %v1101 = vpop.f32.mrb[0].mxu0
      %1102 = vmatprep.mubr.bf16.mxu0 0
      %1103 = vmatmul.mubr.bf16.gmra.mrb[0].mxu0 %v1034
      %v1104 = vpop.f32.mrb[0].mxu0
      %v1105 = vadd.f32 0.0, %v1104
      %v1106 = vpop.f32.mrb[0].mxu0
      %v1107 = vpop.f32.mrb[0].mxu0
      %v1108 = vadd.f32 0.0, %v1107
      %v1109 = vpop.f32.mrb[0].mxu0
      %1110 = vmatprep.mubr.bf16.mxu0 0
      %1111 = vmatmul.mubr.bf16.gmra.mrb[0].mxu0 %v1035
      %v1112 = vpop.f32.mrb[0].mxu0
      %v1113 = vadd.f32 0.0, %v1112
      %v1114 = vpop.f32.mrb[0].mxu0
      %v1115 = vpop.f32.mrb[0].mxu0
      %v1116 = vadd.f32 0.0, %v1115
      %v1117 = vpop.f32.mrb[0].mxu0
      %1118 = vmatprep.mubr.bf16.mxu0 0
      %1119 = vmatmul.mubr.bf16.gmra.mrb[0].mxu0 %v1036
      %v1120 = vpop.f32.mrb[0].mxu0
      %v1121 = vadd.f32 0.0, %v1120
      %v1122 = vpop.f32.mrb[0].mxu0
      %v1123 = vpop.f32.mrb[0].mxu0
      %v1124 = vadd.f32 0.0, %v1123
      %v1125 = vpop.f32.mrb[0].mxu0
      %1126 = vmatprep.mubr.bf16.mxu0 0
      %1127 = vmatmul.mubr.bf16.gmra.mrb[0].mxu0 %v1037
      %v1128 = vpop.f32.mrb[0].mxu0
      %v1129 = vadd.f32 0.0, %v1128
      %v1130 = vpop.f32.mrb[0].mxu0
      %v1131 = vpop.f32.mrb[0].mxu0
      %v1132 = vadd.f32 0.0, %v1131
      %v1133 = vpop.f32.mrb[0].mxu0
      %1134 = vdwg.mxu0
      %v1135 = vpack.c.bf16 %v1076, %v1073
      %v1136 = vpack.c.bf16 %v1084, %v1081
      %v1137 = vpack.c.bf16 %v1092, %v1089
      %v1138 = vpack.c.bf16 %v1100, %v1097
      %v1139 = vpack.c.bf16 %v1108, %v1105
      %v1140 = vpack.c.bf16 %v1116, %v1113
      %v1141 = vpack.c.bf16 %v1124, %v1121
      %v1142 = vpack.c.bf16 %v1132, %v1129
      %v1143 = vpack.c.bf16 %v531, %v529
      %v1144 = vpack.c.bf16 %v535, %v533
      %v1145 = vpack.c.bf16 %v539, %v537
      %v1146 = vpack.c.bf16 %v543, %v541
      %v1147 = vpack.c.bf16 %v547, %v545
      %v1148 = vpack.c.bf16 %v551, %v549
      %v1149 = vpack.c.bf16 %v555, %v553
      %v1150 = vpack.c.bf16 %v559, %v557
      %s1151 = scalar_lea.vmem %s3, 64
      %v1152 = vld [vmem:[%s1151] sm:$0xf]
      %v1153 = vld [vmem:[%s1151 + $0x4] sm:$0xf]
      %v1154 = vld [vmem:[%s1151 + $0x8] sm:$0xf]
      %v1155 = vld [vmem:[%s1151 + $0xc] sm:$0xf]
      %v1156 = vld [vmem:[%s1151 + $0x10] sm:$0xf]
      %v1157 = vld [vmem:[%s1151 + $0x14] sm:$0xf]
      %v1158 = vld [vmem:[%s1151 + $0x18] sm:$0xf]
      %v1159 = vld [vmem:[%s1151 + $0x1c] sm:$0xf]
      %v1160 = vld [vmem:[%s1151 + $0x20] sm:$0xf]
      %v1161 = vld [vmem:[%s1151 + $0x24] sm:$0xf]
      %v1162 = vld [vmem:[%s1151 + $0x28] sm:$0xf]
      %v1163 = vld [vmem:[%s1151 + $0x2c] sm:$0xf]
      %v1164 = vld [vmem:[%s1151 + $0x30] sm:$0xf]
      %v1165 = vld [vmem:[%s1151 + $0x34] sm:$0xf]
      %v1166 = vld [vmem:[%s1151 + $0x38] sm:$0xf]
      %v1167 = vld [vmem:[%s1151 + $0x3c] sm:$0xf]
      %s1168 = scalar_lea.vmem %s4, 128
      %v1169 = vld [vmem:[%s1168] sm:$0xff]
      %v1170 = vld [vmem:[%s1168 + $0x8] sm:$0xff]
      %v1171 = vld [vmem:[%s1168 + $0x10] sm:$0xff]
      %v1172 = vld [vmem:[%s1168 + $0x18] sm:$0xff]
      %v1173 = vld [vmem:[%s1168 + $0x20] sm:$0xff]
      %v1174 = vld [vmem:[%s1168 + $0x28] sm:$0xff]
      %v1175 = vld [vmem:[%s1168 + $0x30] sm:$0xff]
      %v1176 = vld [vmem:[%s1168 + $0x38] sm:$0xff]
      %v1177 = vld [vmem:[%s1168 + $0x40] sm:$0xff]
      %v1178 = vld [vmem:[%s1168 + $0x48] sm:$0xff]
      %v1179 = vld [vmem:[%s1168 + $0x50] sm:$0xff]
      %v1180 = vld [vmem:[%s1168 + $0x58] sm:$0xff]
      %v1181 = vld [vmem:[%s1168 + $0x60] sm:$0xff]
      %v1182 = vld [vmem:[%s1168 + $0x68] sm:$0xff]
      %v1183 = vld [vmem:[%s1168 + $0x70] sm:$0xff]
      %v1184 = vld [vmem:[%s1168 + $0x78] sm:$0xff]
      %v1201 = vunpack.c.l.b16 %v1152
      %v1202 = vunpack.c.l.b16 %v1153
      %v1203 = vunpack.c.l.b16 %v1154
      %v1204 = vunpack.c.l.b16 %v1155
      %v1205 = vunpack.c.l.b16 %v1156
      %v1206 = vunpack.c.l.b16 %v1157
      %v1207 = vunpack.c.l.b16 %v1158
      %v1208 = vunpack.c.l.b16 %v1159
      %v1209 = vunpack.c.l.b16 %v1160
      %v1210 = vunpack.c.l.b16 %v1161
      %v1211 = vunpack.c.l.b16 %v1162
      %v1212 = vunpack.c.l.b16 %v1163
      %v1213 = vunpack.c.l.b16 %v1164
      %v1214 = vunpack.c.l.b16 %v1165
      %v1215 = vunpack.c.l.b16 %v1166
      %v1216 = vunpack.c.l.b16 %v1167
      %v1217 = vpack.c.b16 %v1202, %v1201
      %v1218 = vpack.c.b16 %v1204, %v1203
      %v1219 = vpack.c.b16 %v1206, %v1205
      %v1220 = vpack.c.b16 %v1208, %v1207
      %v1221 = vpack.c.b16 %v1210, %v1209
      %v1222 = vpack.c.b16 %v1212, %v1211
      %v1223 = vpack.c.b16 %v1214, %v1213
      %v1224 = vpack.c.b16 %v1216, %v1215
      %1233 = vmatprep.subr.bf16.mxu0 0
      %1234 = vmatpush1.bf16.xpose.msra.mxu0 %v1143
      %1235 = vmatprep.subr.bf16.mxu0 0
      %1236 = vmatpush1.bf16.xpose.msra.mxu0 %v1144
      %1237 = vmatprep.subr.bf16.mxu0 0
      %1238 = vmatpush1.bf16.xpose.msra.mxu0 %v1145
      %1239 = vmatprep.subr.bf16.mxu0 0
      %1240 = vmatpush1.bf16.xpose.msra.mxu0 %v1146
      %1241 = vmatprep.subr.bf16.mxu0 0
      %1242 = vmatpush1.bf16.xpose.msra.mxu0 %v1147
      %1243 = vmatprep.subr.bf16.mxu0 0
      %1244 = vmatpush1.bf16.xpose.msra.mxu0 %v1148
      %1245 = vmatprep.subr.bf16.mxu0 0
      %1246 = vmatpush1.bf16.xpose.msra.mxu0 %v1149
      %1247 = vmatprep.subr.bf16.mxu0 0
      %1248 = vmatpush1.bf16.xpose.msra.mxu0 %v1150
      %1249 = vmatprep.subr.bf16.mxu0 0
      %1250 = vmatpush1.bf16.xpose.msra.mxu0 0
      %1251 = vmatprep.subr.bf16.mxu0 0
      %1252 = vmatpush1.bf16.xpose.msra.mxu0 0
      %1253 = vmatprep.subr.bf16.mxu0 0
      %1254 = vmatpush1.bf16.xpose.msra.mxu0 0
      %1255 = vmatprep.subr.bf16.mxu0 0
      %1256 = vmatpush1.bf16.xpose.msra.mxu0 0
      %1257 = vmatprep.subr.bf16.mxu0 0
      %1258 = vmatpush1.bf16.xpose.msra.mxu0 0
      %1259 = vmatprep.subr.bf16.mxu0 0
      %1260 = vmatpush1.bf16.xpose.msra.mxu0 0
      %1261 = vmatprep.subr.bf16.mxu0 0
      %1262 = vmatpush1.bf16.xpose.msra.mxu0 0
      %1263 = vmatprep.subr.bf16.mxu0 0
      %1264 = vmatpush1.bf16.xpose.msra.mxu0 0
      %1265 = vmatprep.mubr.bf16.mxu0 0
      %1266 = vmatmul.mubr.bf16.gmra.mrb[0].mxu0 %v1217
      %v1267 = vpop.f32.mrb[0].mxu0
      %v1268 = vadd.f32 0.0, %v1267
      %v1269 = vpop.f32.mrb[0].mxu0
      %v1270 = vpop.f32.mrb[0].mxu0
      %v1271 = vadd.f32 0.0, %v1270
      %v1272 = vpop.f32.mrb[0].mxu0
      %1273 = vmatprep.mubr.bf16.mxu0 0
      %1274 = vmatmul.mubr.bf16.gmra.mrb[0].mxu0 %v1218
      %v1275 = vpop.f32.mrb[0].mxu0
      %v1276 = vadd.f32 0.0, %v1275
      %v1277 = vpop.f32.mrb[0].mxu0
      %v1278 = vpop.f32.mrb[0].mxu0
      %v1279 = vadd.f32 0.0, %v1278
      %v1280 = vpop.f32.mrb[0].mxu0
      %1281 = vmatprep.mubr.bf16.mxu0 0
      %1282 = vmatmul.mubr.bf16.gmra.mrb[0].mxu0 %v1219
      %v1283 = vpop.f32.mrb[0].mxu0
      %v1284 = vadd.f32 0.0, %v1283
      %v1285 = vpop.f32.mrb[0].mxu0
      %v1286 = vpop.f32.mrb[0].mxu0
      %v1287 = vadd.f32 0.0, %v1286
      %v1288 = vpop.f32.mrb[0].mxu0
      %1289 = vmatprep.mubr.bf16.mxu0 0
      %1290 = vmatmul.mubr.bf16.gmra.mrb[0].mxu0 %v1220
      %v1291 = vpop.f32.mrb[0].mxu0
      %v1292 = vadd.f32 0.0, %v1291
      %v1293 = vpop.f32.mrb[0].mxu0
      %v1294 = vpop.f32.mrb[0].mxu0
      %v1295 = vadd.f32 0.0, %v1294
      %v1296 = vpop.f32.mrb[0].mxu0
      %1297 = vmatprep.mubr.bf16.mxu0 0
      %1298 = vmatmul.mubr.bf16.gmra.mrb[0].mxu0 %v1221
      %v1299 = vpop.f32.mrb[0].mxu0
      %v1300 = vadd.f32 0.0, %v1299
      %v1301 = vpop.f32.mrb[0].mxu0
      %v1302 = vpop.f32.mrb[0].mxu0
      %v1303 = vadd.f32 0.0, %v1302
      %v1304 = vpop.f32.mrb[0].mxu0
      %1305 = vmatprep.mubr.bf16.mxu0 0
      %1306 = vmatmul.mubr.bf16.gmra.mrb[0].mxu0 %v1222
      %v1307 = vpop.f32.mrb[0].mxu0
      %v1308 = vadd.f32 0.0, %v1307
      %v1309 = vpop.f32.mrb[0].mxu0
      %v1310 = vpop.f32.mrb[0].mxu0
      %v1311 = vadd.f32 0.0, %v1310
      %v1312 = vpop.f32.mrb[0].mxu0
      %1313 = vmatprep.mubr.bf16.mxu0 0
      %1314 = vmatmul.mubr.bf16.gmra.mrb[0].mxu0 %v1223
      %v1315 = vpop.f32.mrb[0].mxu0
      %v1316 = vadd.f32 0.0, %v1315
      %v1317 = vpop.f32.mrb[0].mxu0
      %v1318 = vpop.f32.mrb[0].mxu0
      %v1319 = vadd.f32 0.0, %v1318
      %v1320 = vpop.f32.mrb[0].mxu0
      %1321 = vmatprep.mubr.bf16.mxu0 0
      %1322 = vmatmul.mubr.bf16.gmra.mrb[0].mxu0 %v1224
      %v1323 = vpop.f32.mrb[0].mxu0
      %v1324 = vadd.f32 0.0, %v1323
      %v1325 = vpop.f32.mrb[0].mxu0
      %v1326 = vpop.f32.mrb[0].mxu0
      %v1327 = vadd.f32 0.0, %v1326
      %v1328 = vpop.f32.mrb[0].mxu0
      %1329 = vdwg.mxu0
      %v1330 = vmul.f32 %v1268, 2.0
      %v1331 = vmul.f32 %v1271, 2.0
      %v1332 = vmul.f32 %v1276, 2.0
      %v1333 = vmul.f32 %v1279, 2.0
      %v1334 = vmul.f32 %v1284, 2.0
      %v1335 = vmul.f32 %v1287, 2.0
      %v1336 = vmul.f32 %v1292, 2.0
      %v1337 = vmul.f32 %v1295, 2.0
      %v1338 = vmul.f32 %v1300, 2.0
      %v1339 = vmul.f32 %v1303, 2.0
      %v1340 = vmul.f32 %v1308, 2.0
      %v1341 = vmul.f32 %v1311, 2.0
      %v1342 = vmul.f32 %v1316, 2.0
      %v1343 = vmul.f32 %v1319, 2.0
      %v1344 = vmul.f32 %v1324, 2.0
      %v1345 = vmul.f32 %v1327, 2.0
      %1347 = vset.pattern.permute.xlu0 0
      %1348 = vperm.xlu0 %1347, %v1169
      %v1349 = vpop.permute.xlu0 %1348
      %1352 = vset.pattern.permute.xlu0 0
      %1353 = vperm.xlu0 %1352, %v1170
      %v1354 = vpop.permute.xlu0 %1353
      %1357 = vset.pattern.permute.xlu0 0
      %1358 = vperm.xlu0 %1357, %v1171
      %v1359 = vpop.permute.xlu0 %1358
      %1362 = vset.pattern.permute.xlu0 0
      %1363 = vperm.xlu0 %1362, %v1172
      %v1364 = vpop.permute.xlu0 %1363
      %1367 = vset.pattern.permute.xlu0 0
      %1368 = vperm.xlu0 %1367, %v1173
      %v1369 = vpop.permute.xlu0 %1368
      %1372 = vset.pattern.permute.xlu0 0
      %1373 = vperm.xlu0 %1372, %v1174
      %v1374 = vpop.permute.xlu0 %1373
      %1377 = vset.pattern.permute.xlu0 0
      %1378 = vperm.xlu0 %1377, %v1175
      %v1379 = vpop.permute.xlu0 %1378
      %1382 = vset.pattern.permute.xlu0 0
      %1383 = vperm.xlu0 %1382, %v1176
      %v1384 = vpop.permute.xlu0 %1383
      %1387 = vset.pattern.permute.xlu0 0
      %1388 = vperm.xlu0 %1387, %v1177
      %v1389 = vpop.permute.xlu0 %1388
      %1392 = vset.pattern.permute.xlu0 0
      %1393 = vperm.xlu0 %1392, %v1178
      %v1394 = vpop.permute.xlu0 %1393
      %1397 = vset.pattern.permute.xlu0 0
      %1398 = vperm.xlu0 %1397, %v1179
      %v1399 = vpop.permute.xlu0 %1398
      %1402 = vset.pattern.permute.xlu0 0
      %1403 = vperm.xlu0 %1402, %v1180
      %v1404 = vpop.permute.xlu0 %1403
      %1407 = vset.pattern.permute.xlu0 0
      %1408 = vperm.xlu0 %1407, %v1181
      %v1409 = vpop.permute.xlu0 %1408
      %1412 = vset.pattern.permute.xlu0 0
      %1413 = vperm.xlu0 %1412, %v1182
      %v1414 = vpop.permute.xlu0 %1413
      %1417 = vset.pattern.permute.xlu0 0
      %1418 = vperm.xlu0 %1417, %v1183
      %v1419 = vpop.permute.xlu0 %1418
      %1422 = vset.pattern.permute.xlu0 0
      %1423 = vperm.xlu0 %1422, %v1184
      %v1424 = vpop.permute.xlu0 %1423
      %v1426 = vsub.f32 %v1349, %v1330
      %v1427 = vsub.f32 %v1354, %v1331
      %v1428 = vsub.f32 %v1359, %v1332
      %v1429 = vsub.f32 %v1364, %v1333
      %v1430 = vsub.f32 %v1369, %v1334
      %v1431 = vsub.f32 %v1374, %v1335
      %v1432 = vsub.f32 %v1379, %v1336
      %v1433 = vsub.f32 %v1384, %v1337
      %v1434 = vsub.f32 %v1389, %v1338
      %v1435 = vsub.f32 %v1394, %v1339
      %v1436 = vsub.f32 %v1399, %v1340
      %v1437 = vsub.f32 %v1404, %v1341
      %v1438 = vsub.f32 %v1409, %v1342
      %v1439 = vsub.f32 %v1414, %v1343
      %v1440 = vsub.f32 %v1419, %v1344
      %v1441 = vsub.f32 %v1424, %v1345
      %v1442 = vmin.f32 %v1426, %v1430
      %v1443 = vmin.f32 %v1427, %v1431
      %v1444 = vmin.f32 %v1428, %v1432
      %v1445 = vmin.f32 %v1429, %v1433
      %v1446 = vmin.f32 %v1442, %v1434
      %v1447 = vmin.f32 %v1443, %v1435
      %v1448 = vmin.f32 %v1444, %v1436
      %v1449 = vmin.f32 %v1445, %v1437
      %v1450 = vmin.f32 %v1446, %v1438
      %v1451 = vmin.f32 %v1447, %v1439
      %v1452 = vmin.f32 %v1448, %v1440
      %v1453 = vmin.f32 %v1449, %v1441
      %v1454 = vmin.f32 %v1450, %v1451
      %v1455 = vmin.f32 %v1452, %v1453
      %v1456 = vmin.f32 %v1454, %v1455
      %v1457 = vrot.slane %v1456, 4
      %v1458 = vmin.f32 %v1456, %v1457
      %v1459 = vrot.slane %v1458, 2
      %v1460 = vmin.f32 %v1458, %v1459
      %v1461 = vrot.slane %v1460, 1
      %v1462 = vmin.f32 %v1460, %v1461
      %vm1463 = vcmp.le.f32.partialorder %v1426, %v1462
      %vm1464 = vcmp.le.f32.partialorder %v1427, %v1462
      %vm1465 = vcmp.le.f32.partialorder %v1428, %v1462
      %vm1466 = vcmp.le.f32.partialorder %v1429, %v1462
      %vm1467 = vcmp.le.f32.partialorder %v1430, %v1462
      %vm1468 = vcmp.le.f32.partialorder %v1431, %v1462
      %vm1469 = vcmp.le.f32.partialorder %v1432, %v1462
      %vm1470 = vcmp.le.f32.partialorder %v1433, %v1462
      %vm1471 = vcmp.le.f32.partialorder %v1434, %v1462
      %vm1472 = vcmp.le.f32.partialorder %v1435, %v1462
      %vm1473 = vcmp.le.f32.partialorder %v1436, %v1462
      %vm1474 = vcmp.le.f32.partialorder %v1437, %v1462
      %vm1475 = vcmp.le.f32.partialorder %v1438, %v1462
      %vm1476 = vcmp.le.f32.partialorder %v1439, %v1462
      %vm1477 = vcmp.le.f32.partialorder %v1440, %v1462
      %vm1478 = vcmp.le.f32.partialorder %v1441, %v1462
      %v1479 = vsel %vm1463, %v879, 128
      %v1480 = vsel %vm1464, %v880, 128
      %v1481 = vsel %vm1465, %v881, 128
      %v1482 = vsel %vm1466, %v882, 128
      %v1483 = vsel %vm1467, %v883, 128
      %v1484 = vsel %vm1468, %v884, 128
      %v1485 = vsel %vm1469, %v885, 128
      %v1486 = vsel %vm1470, %v886, 128
      %v1487 = vsel %vm1471, %v887, 128
      %v1488 = vsel %vm1472, %v888, 128
      %v1489 = vsel %vm1473, %v889, 128
      %v1490 = vsel %vm1474, %v890, 128
      %v1491 = vsel %vm1475, %v891, 128
      %v1492 = vsel %vm1476, %v892, 128
      %v1493 = vsel %vm1477, %v893, 128
      %v1494 = vsel %vm1478, %v894, 128
      %vm1495 = vcmp.lt.s32.totalorder %v1479, %v1483
      %v1496 = vsel %vm1495, %v1479, %v1483
      %vm1497 = vcmp.lt.s32.totalorder %v1480, %v1484
      %v1498 = vsel %vm1497, %v1480, %v1484
      %vm1499 = vcmp.lt.s32.totalorder %v1481, %v1485
      %v1500 = vsel %vm1499, %v1481, %v1485
      %vm1501 = vcmp.lt.s32.totalorder %v1482, %v1486
      %v1502 = vsel %vm1501, %v1482, %v1486
      %vm1503 = vcmp.lt.s32.totalorder %v1496, %v1487
      %v1504 = vsel %vm1503, %v1496, %v1487
      %vm1505 = vcmp.lt.s32.totalorder %v1498, %v1488
      %v1506 = vsel %vm1505, %v1498, %v1488
      %vm1507 = vcmp.lt.s32.totalorder %v1500, %v1489
      %v1508 = vsel %vm1507, %v1500, %v1489
      %vm1509 = vcmp.lt.s32.totalorder %v1502, %v1490
      %v1510 = vsel %vm1509, %v1502, %v1490
      %vm1511 = vcmp.lt.s32.totalorder %v1504, %v1491
      %v1512 = vsel %vm1511, %v1504, %v1491
      %vm1513 = vcmp.lt.s32.totalorder %v1506, %v1492
      %v1514 = vsel %vm1513, %v1506, %v1492
      %vm1515 = vcmp.lt.s32.totalorder %v1508, %v1493
      %v1516 = vsel %vm1515, %v1508, %v1493
      %vm1517 = vcmp.lt.s32.totalorder %v1510, %v1494
      %v1518 = vsel %vm1517, %v1510, %v1494
      %vm1519 = vcmp.lt.s32.totalorder %v1512, %v1514
      %v1520 = vsel %vm1519, %v1512, %v1514
      %vm1521 = vcmp.lt.s32.totalorder %v1516, %v1518
      %v1522 = vsel %vm1521, %v1516, %v1518
      %vm1523 = vcmp.lt.s32.totalorder %v1520, %v1522
      %v1524 = vsel %vm1523, %v1520, %v1522
      %v1525 = vrot.slane %v1524, 4
      %vm1526 = vcmp.lt.s32.totalorder %v1524, %v1525
      %v1527 = vsel %vm1526, %v1524, %v1525
      %v1528 = vrot.slane %v1527, 2
      %vm1529 = vcmp.lt.s32.totalorder %v1527, %v1528
      %v1530 = vsel %vm1529, %v1527, %v1528
      %v1531 = vrot.slane %v1530, 1
      %vm1532 = vcmp.lt.s32.totalorder %v1530, %v1531
      %v1533 = vsel %vm1532, %v1530, %v1531
      %vm1534 = vcmp.eq.s32.totalorder %v879, %v1533
      %vm1535 = vcmp.eq.s32.totalorder %v880, %v1533
      %vm1536 = vcmp.eq.s32.totalorder %v881, %v1533
      %vm1537 = vcmp.eq.s32.totalorder %v882, %v1533
      %vm1538 = vcmp.eq.s32.totalorder %v883, %v1533
      %vm1539 = vcmp.eq.s32.totalorder %v884, %v1533
      %vm1540 = vcmp.eq.s32.totalorder %v885, %v1533
      %vm1541 = vcmp.eq.s32.totalorder %v886, %v1533
      %vm1542 = vcmp.eq.s32.totalorder %v887, %v1533
      %vm1543 = vcmp.eq.s32.totalorder %v888, %v1533
      %vm1544 = vcmp.eq.s32.totalorder %v889, %v1533
      %vm1545 = vcmp.eq.s32.totalorder %v890, %v1533
      %vm1546 = vcmp.eq.s32.totalorder %v891, %v1533
      %vm1547 = vcmp.eq.s32.totalorder %v892, %v1533
      %vm1548 = vcmp.eq.s32.totalorder %v893, %v1533
      %vm1549 = vcmp.eq.s32.totalorder %v894, %v1533
      %v1550 = vsel %vm1534, 1, 0
      %v1551 = vsel %vm1535, 1, 0
      %v1552 = vsel %vm1536, 1, 0
      %v1553 = vsel %vm1537, 1, 0
      %v1554 = vsel %vm1538, 1, 0
      %v1555 = vsel %vm1539, 1, 0
      %v1556 = vsel %vm1540, 1, 0
      %v1557 = vsel %vm1541, 1, 0
      %v1558 = vsel %vm1542, 1, 0
      %v1559 = vsel %vm1543, 1, 0
      %v1560 = vsel %vm1544, 1, 0
      %v1561 = vsel %vm1545, 1, 0
      %v1562 = vsel %vm1546, 1, 0
      %v1563 = vsel %vm1547, 1, 0
      %v1564 = vsel %vm1548, 1, 0
      %v1565 = vsel %vm1549, 1, 0
      %v1566 = vcvt.s32.f32 %v1550
      %v1567 = vcvt.s32.f32 %v1551
      %v1568 = vcvt.s32.f32 %v1552
      %v1569 = vcvt.s32.f32 %v1553
      %v1570 = vcvt.s32.f32 %v1554
      %v1571 = vcvt.s32.f32 %v1555
      %v1572 = vcvt.s32.f32 %v1556
      %v1573 = vcvt.s32.f32 %v1557
      %v1574 = vcvt.s32.f32 %v1558
      %v1575 = vcvt.s32.f32 %v1559
      %v1576 = vcvt.s32.f32 %v1560
      %v1577 = vcvt.s32.f32 %v1561
      %v1578 = vcvt.s32.f32 %v1562
      %v1579 = vcvt.s32.f32 %v1563
      %v1580 = vcvt.s32.f32 %v1564
      %v1581 = vcvt.s32.f32 %v1565
      %v1582 = vpack.c.bf16 %v1567, %v1566
      %v1583 = vpack.c.bf16 %v1569, %v1568
      %v1584 = vpack.c.bf16 %v1571, %v1570
      %v1585 = vpack.c.bf16 %v1573, %v1572
      %v1586 = vpack.c.bf16 %v1575, %v1574
      %v1587 = vpack.c.bf16 %v1577, %v1576
      %v1588 = vpack.c.bf16 %v1579, %v1578
      %v1589 = vpack.c.bf16 %v1581, %v1580
      %1590 = vxpose.xlu0.c.b16.start [1/8] %v1582, 128
      %1591 = vxpose.xlu0.c.b16.cont [2/8] %v1583, 128
      %1592 = vxpose.xlu0.c.b16.cont [3/8] %v1584, 128
      %1593 = vxpose.xlu0.c.b16.cont [4/8] %v1585, 128
      %1594 = vxpose.xlu0.c.b16.cont [5/8] %v1586, 128
      %1595 = vxpose.xlu0.c.b16.cont [6/8] %v1587, 128
      %1596 = vxpose.xlu0.c.b16.cont [7/8] %v1588, 128
      %1597 = vxpose.xlu0.c.b16.end [8/8] %v1589, 128
      %v1598 = vpop.trf.xlu0
      %v1599 = vpop.trf.xlu0
      %v1600 = vpop.trf.xlu0
      %v1601 = vpop.trf.xlu0
      %v1602 = vpop.trf.xlu0
      %v1603 = vpop.trf.xlu0
      %v1604 = vpop.trf.xlu0
      %v1605 = vpop.trf.xlu0
      %1606 = vmatprep.subr.bf16.mxu0 0
      %1607 = vmatpush1.bf16.msra.mxu0 %v1217
      %1608 = vmatprep.subr.bf16.mxu0 0
      %1609 = vmatpush1.bf16.msra.mxu0 %v1218
      %1610 = vmatprep.subr.bf16.mxu0 0
      %1611 = vmatpush1.bf16.msra.mxu0 %v1219
      %1612 = vmatprep.subr.bf16.mxu0 0
      %1613 = vmatpush1.bf16.msra.mxu0 %v1220
      %1614 = vmatprep.subr.bf16.mxu0 0
      %1615 = vmatpush1.bf16.msra.mxu0 %v1221
      %1616 = vmatprep.subr.bf16.mxu0 0
      %1617 = vmatpush1.bf16.msra.mxu0 %v1222
      %1618 = vmatprep.subr.bf16.mxu0 0
      %1619 = vmatpush1.bf16.msra.mxu0 %v1223
      %1620 = vmatprep.subr.bf16.mxu0 0
      %1621 = vmatpush1.bf16.msra.mxu0 %v1224
      %1622 = vmatprep.subr.bf16.mxu0 0
      %1623 = vmatpush1.bf16.msra.mxu0 0
      %1624 = vmatprep.subr.bf16.mxu0 0
      %1625 = vmatpush1.bf16.msra.mxu0 0
      %1626 = vmatprep.subr.bf16.mxu0 0
      %1627 = vmatpush1.bf16.msra.mxu0 0
      %1628 = vmatprep.subr.bf16.mxu0 0
      %1629 = vmatpush1.bf16.msra.mxu0 0
      %1630 = vmatprep.subr.bf16.mxu0 0
      %1631 = vmatpush1.bf16.msra.mxu0 0
      %1632 = vmatprep.subr.bf16.mxu0 0
      %1633 = vmatpush1.bf16.msra.mxu0 0
      %1634 = vmatprep.subr.bf16.mxu0 0
      %1635 = vmatpush1.bf16.msra.mxu0 0
      %1636 = vmatprep.subr.bf16.mxu0 0
      %1637 = vmatpush1.bf16.msra.mxu0 0
      %1638 = vmatprep.mubr.bf16.mxu0 0
      %1639 = vmatmul.mubr.bf16.gmra.mrb[0].mxu0 %v1598
      %v1640 = vpop.f32.mrb[0].mxu0
      %v1641 = vadd.f32 0.0, %v1640
      %v1642 = vpop.f32.mrb[0].mxu0
      %v1643 = vpop.f32.mrb[0].mxu0
      %v1644 = vadd.f32 0.0, %v1643
      %v1645 = vpop.f32.mrb[0].mxu0
      %1646 = vmatprep.mubr.bf16.mxu0 0
      %1647 = vmatmul.mubr.bf16.gmra.mrb[0].mxu0 %v1599
      %v1648 = vpop.f32.mrb[0].mxu0
      %v1649 = vadd.f32 0.0, %v1648
      %v1650 = vpop.f32.mrb[0].mxu0
      %v1651 = vpop.f32.mrb[0].mxu0
      %v1652 = vadd.f32 0.0, %v1651
      %v1653 = vpop.f32.mrb[0].mxu0
      %1654 = vmatprep.mubr.bf16.mxu0 0
      %1655 = vmatmul.mubr.bf16.gmra.mrb[0].mxu0 %v1600
      %v1656 = vpop.f32.mrb[0].mxu0
      %v1657 = vadd.f32 0.0, %v1656
      %v1658 = vpop.f32.mrb[0].mxu0
      %v1659 = vpop.f32.mrb[0].mxu0
      %v1660 = vadd.f32 0.0, %v1659
      %v1661 = vpop.f32.mrb[0].mxu0
      %1662 = vmatprep.mubr.bf16.mxu0 0
      %1663 = vmatmul.mubr.bf16.gmra.mrb[0].mxu0 %v1601
      %v1664 = vpop.f32.mrb[0].mxu0
      %v1665 = vadd.f32 0.0, %v1664
      %v1666 = vpop.f32.mrb[0].mxu0
      %v1667 = vpop.f32.mrb[0].mxu0
      %v1668 = vadd.f32 0.0, %v1667
      %v1669 = vpop.f32.mrb[0].mxu0
      %1670 = vmatprep.mubr.bf16.mxu0 0
      %1671 = vmatmul.mubr.bf16.gmra.mrb[0].mxu0 %v1602
      %v1672 = vpop.f32.mrb[0].mxu0
      %v1673 = vadd.f32 0.0, %v1672
      %v1674 = vpop.f32.mrb[0].mxu0
      %v1675 = vpop.f32.mrb[0].mxu0
      %v1676 = vadd.f32 0.0, %v1675
      %v1677 = vpop.f32.mrb[0].mxu0
      %1678 = vmatprep.mubr.bf16.mxu0 0
      %1679 = vmatmul.mubr.bf16.gmra.mrb[0].mxu0 %v1603
      %v1680 = vpop.f32.mrb[0].mxu0
      %v1681 = vadd.f32 0.0, %v1680
      %v1682 = vpop.f32.mrb[0].mxu0
      %v1683 = vpop.f32.mrb[0].mxu0
      %v1684 = vadd.f32 0.0, %v1683
      %v1685 = vpop.f32.mrb[0].mxu0
      %1686 = vmatprep.mubr.bf16.mxu0 0
      %1687 = vmatmul.mubr.bf16.gmra.mrb[0].mxu0 %v1604
      %v1688 = vpop.f32.mrb[0].mxu0
      %v1689 = vadd.f32 0.0, %v1688
      %v1690 = vpop.f32.mrb[0].mxu0
      %v1691 = vpop.f32.mrb[0].mxu0
      %v1692 = vadd.f32 0.0, %v1691
      %v1693 = vpop.f32.mrb[0].mxu0
      %1694 = vmatprep.mubr.bf16.mxu0 0
      %1695 = vmatmul.mubr.bf16.gmra.mrb[0].mxu0 %v1605
      %v1696 = vpop.f32.mrb[0].mxu0
      %v1697 = vadd.f32 0.0, %v1696
      %v1698 = vpop.f32.mrb[0].mxu0
      %v1699 = vpop.f32.mrb[0].mxu0
      %v1700 = vadd.f32 0.0, %v1699
      %v1701 = vpop.f32.mrb[0].mxu0
      %1702 = vdwg.mxu0
      %v1703 = vpack.c.bf16 %v1644, %v1641
      %v1704 = vpack.c.bf16 %v1652, %v1649
      %v1705 = vpack.c.bf16 %v1660, %v1657
      %v1706 = vpack.c.bf16 %v1668, %v1665
      %v1707 = vpack.c.bf16 %v1676, %v1673
      %v1708 = vpack.c.bf16 %v1684, %v1681
      %v1709 = vpack.c.bf16 %v1692, %v1689
      %v1710 = vpack.c.bf16 %v1700, %v1697
      %v1711 = vld [vmem:[%s5] sm:$0xf]
      %v1712 = vld [vmem:[%s5 + $0x4] sm:$0xf]
      %v1713 = vld [vmem:[%s5 + $0x8] sm:$0xf]
      %v1714 = vld [vmem:[%s5 + $0xc] sm:$0xf]
      %v1715 = vld [vmem:[%s5 + $0x10] sm:$0xf]
      %v1716 = vld [vmem:[%s5 + $0x14] sm:$0xf]
      %v1717 = vld [vmem:[%s5 + $0x18] sm:$0xf]
      %v1718 = vld [vmem:[%s5 + $0x1c] sm:$0xf]
      %v1719 = vld [vmem:[%s5 + $0x20] sm:$0xf]
      %v1720 = vld [vmem:[%s5 + $0x24] sm:$0xf]
      %v1721 = vld [vmem:[%s5 + $0x28] sm:$0xf]
      %v1722 = vld [vmem:[%s5 + $0x2c] sm:$0xf]
      %v1723 = vld [vmem:[%s5 + $0x30] sm:$0xf]
      %v1724 = vld [vmem:[%s5 + $0x34] sm:$0xf]
      %v1725 = vld [vmem:[%s5 + $0x38] sm:$0xf]
      %v1726 = vld [vmem:[%s5 + $0x3c] sm:$0xf]
      %v1727 = vld [vmem:[%s5 + $0x40] sm:$0xf]
      %v1728 = vld [vmem:[%s5 + $0x44] sm:$0xf]
      %v1729 = vld [vmem:[%s5 + $0x48] sm:$0xf]
      %v1730 = vld [vmem:[%s5 + $0x4c] sm:$0xf]
      %v1731 = vld [vmem:[%s5 + $0x50] sm:$0xf]
      %v1732 = vld [vmem:[%s5 + $0x54] sm:$0xf]
      %v1733 = vld [vmem:[%s5 + $0x58] sm:$0xf]
      %v1734 = vld [vmem:[%s5 + $0x5c] sm:$0xf]
      %v1735 = vld [vmem:[%s5 + $0x60] sm:$0xf]
      %v1736 = vld [vmem:[%s5 + $0x64] sm:$0xf]
      %v1737 = vld [vmem:[%s5 + $0x68] sm:$0xf]
      %v1738 = vld [vmem:[%s5 + $0x6c] sm:$0xf]
      %v1739 = vld [vmem:[%s5 + $0x70] sm:$0xf]
      %v1740 = vld [vmem:[%s5 + $0x74] sm:$0xf]
      %v1741 = vld [vmem:[%s5 + $0x78] sm:$0xf]
      %v1742 = vld [vmem:[%s5 + $0x7c] sm:$0xf]
      %v1743 = vld [vmem:[%s6] sm:$0x1]
      %v1745 = vlaneseq
      %v1746 = vshrl.u32 %v1745, 7
      %v1747 = vsub.s32 0, %v1746
      %v1748 = vrot.slane %v1743, %v1747
      %v1782 = vunpack.c.l.b16 %v1711
      %v1783 = vunpack.c.l.b16 %v1712
      %v1784 = vunpack.c.l.b16 %v1713
      %v1785 = vunpack.c.l.b16 %v1714
      %v1786 = vunpack.c.l.b16 %v1715
      %v1787 = vunpack.c.l.b16 %v1716
      %v1788 = vunpack.c.l.b16 %v1717
      %v1789 = vunpack.c.l.b16 %v1718
      %v1790 = vunpack.c.l.b16 %v1719
      %v1791 = vunpack.c.l.b16 %v1720
      %v1792 = vunpack.c.l.b16 %v1721
      %v1793 = vunpack.c.l.b16 %v1722
      %v1794 = vunpack.c.l.b16 %v1723
      %v1795 = vunpack.c.l.b16 %v1724
      %v1796 = vunpack.c.l.b16 %v1725
      %v1797 = vunpack.c.l.b16 %v1726
      %v1798 = vunpack.c.l.b16 %v1727
      %v1799 = vunpack.c.l.b16 %v1728
      %v1800 = vunpack.c.l.b16 %v1729
      %v1801 = vunpack.c.l.b16 %v1730
      %v1802 = vunpack.c.l.b16 %v1731
      %v1803 = vunpack.c.l.b16 %v1732
      %v1804 = vunpack.c.l.b16 %v1733
      %v1805 = vunpack.c.l.b16 %v1734
      %v1806 = vunpack.c.l.b16 %v1735
      %v1807 = vunpack.c.l.b16 %v1736
      %v1808 = vunpack.c.l.b16 %v1737
      %v1809 = vunpack.c.l.b16 %v1738
      %v1810 = vunpack.c.l.b16 %v1739
      %v1811 = vunpack.c.l.b16 %v1740
      %v1812 = vunpack.c.l.b16 %v1741
      %v1813 = vunpack.c.l.b16 %v1742
      %v1814 = vpack.c.b16 %v1783, %v1782
      %v1815 = vpack.c.b16 %v1785, %v1784
      %v1816 = vpack.c.b16 %v1787, %v1786
      %v1817 = vpack.c.b16 %v1789, %v1788
      %v1818 = vpack.c.b16 %v1791, %v1790
      %v1819 = vpack.c.b16 %v1793, %v1792
      %v1820 = vpack.c.b16 %v1795, %v1794
      %v1821 = vpack.c.b16 %v1797, %v1796
      %v1822 = vpack.c.b16 %v1799, %v1798
      %v1823 = vpack.c.b16 %v1801, %v1800
      %v1824 = vpack.c.b16 %v1803, %v1802
      %v1825 = vpack.c.b16 %v1805, %v1804
      %v1826 = vpack.c.b16 %v1807, %v1806
      %v1827 = vpack.c.b16 %v1809, %v1808
      %v1828 = vpack.c.b16 %v1811, %v1810
      %v1829 = vpack.c.b16 %v1813, %v1812
      %1846 = vmatprep.subr.bf16.mxu0 0
      %1847 = vmatpush1.bf16.msra.mxu0 %v1814
      %1848 = vmatprep.subr.bf16.mxu0 0
      %1849 = vmatpush1.bf16.msra.mxu0 %v1815
      %1850 = vmatprep.subr.bf16.mxu0 0
      %1851 = vmatpush1.bf16.msra.mxu0 %v1816
      %1852 = vmatprep.subr.bf16.mxu0 0
      %1853 = vmatpush1.bf16.msra.mxu0 %v1817
      %1854 = vmatprep.subr.bf16.mxu0 0
      %1855 = vmatpush1.bf16.msra.mxu0 %v1818
      %1856 = vmatprep.subr.bf16.mxu0 0
      %1857 = vmatpush1.bf16.msra.mxu0 %v1819
      %1858 = vmatprep.subr.bf16.mxu0 0
      %1859 = vmatpush1.bf16.msra.mxu0 %v1820
      %1860 = vmatprep.subr.bf16.mxu0 0
      %1861 = vmatpush1.bf16.msra.mxu0 %v1821
      %1862 = vmatprep.subr.bf16.mxu0 0
      %1863 = vmatpush1.bf16.msra.mxu0 %v1822
      %1864 = vmatprep.subr.bf16.mxu0 0
      %1865 = vmatpush1.bf16.msra.mxu0 %v1823
      %1866 = vmatprep.subr.bf16.mxu0 0
      %1867 = vmatpush1.bf16.msra.mxu0 %v1824
      %1868 = vmatprep.subr.bf16.mxu0 0
      %1869 = vmatpush1.bf16.msra.mxu0 %v1825
      %1870 = vmatprep.subr.bf16.mxu0 0
      %1871 = vmatpush1.bf16.msra.mxu0 %v1826
      %1872 = vmatprep.subr.bf16.mxu0 0
      %1873 = vmatpush1.bf16.msra.mxu0 %v1827
      %1874 = vmatprep.subr.bf16.mxu0 0
      %1875 = vmatpush1.bf16.msra.mxu0 %v1828
      %1876 = vmatprep.subr.bf16.mxu0 0
      %1877 = vmatpush1.bf16.msra.mxu0 %v1829
      %1878 = vmatprep.mubr.bf16.mxu0 %v1703
      %1879 = vmatmul.mubr.bf16.gmra.mrb[0].mxu0 %v1135
      %v1880 = vpop.f32.mrb[0].mxu0
      %v1881 = vadd.f32 %v1748, %v1880
      %v1882 = vpop.f32.mrb[0].mxu0
      %v1883 = vpop.f32.mrb[0].mxu0
      %v1884 = vadd.f32 %v1748, %v1883
      %v1885 = vpop.f32.mrb[0].mxu0
      %1886 = vmatprep.mubr.bf16.mxu0 %v1704
      %1887 = vmatmul.mubr.bf16.gmra.mrb[0].mxu0 %v1136
      %v1888 = vpop.f32.mrb[0].mxu0
      %v1889 = vadd.f32 %v1748, %v1888
      %v1890 = vpop.f32.mrb[0].mxu0
      %v1891 = vpop.f32.mrb[0].mxu0
      %v1892 = vadd.f32 %v1748, %v1891
      %v1893 = vpop.f32.mrb[0].mxu0
      %1894 = vmatprep.mubr.bf16.mxu0 %v1705
      %1895 = vmatmul.mubr.bf16.gmra.mrb[0].mxu0 %v1137
      %v1896 = vpop.f32.mrb[0].mxu0
      %v1897 = vadd.f32 %v1748, %v1896
      %v1898 = vpop.f32.mrb[0].mxu0
      %v1899 = vpop.f32.mrb[0].mxu0
      %v1900 = vadd.f32 %v1748, %v1899
      %v1901 = vpop.f32.mrb[0].mxu0
      %1902 = vmatprep.mubr.bf16.mxu0 %v1706
      %1903 = vmatmul.mubr.bf16.gmra.mrb[0].mxu0 %v1138
      %v1904 = vpop.f32.mrb[0].mxu0
      %v1905 = vadd.f32 %v1748, %v1904
      %v1906 = vpop.f32.mrb[0].mxu0
      %v1907 = vpop.f32.mrb[0].mxu0
      %v1908 = vadd.f32 %v1748, %v1907
      %v1909 = vpop.f32.mrb[0].mxu0
      %1910 = vmatprep.mubr.bf16.mxu0 %v1707
      %1911 = vmatmul.mubr.bf16.gmra.mrb[0].mxu0 %v1139
      %v1912 = vpop.f32.mrb[0].mxu0
      %v1913 = vadd.f32 %v1748, %v1912
      %v1914 = vpop.f32.mrb[0].mxu0
      %v1915 = vpop.f32.mrb[0].mxu0
      %v1916 = vadd.f32 %v1748, %v1915
      %v1917 = vpop.f32.mrb[0].mxu0
      %1918 = vmatprep.mubr.bf16.mxu0 %v1708
      %1919 = vmatmul.mubr.bf16.gmra.mrb[0].mxu0 %v1140
      %v1920 = vpop.f32.mrb[0].mxu0
      %v1921 = vadd.f32 %v1748, %v1920
      %v1922 = vpop.f32.mrb[0].mxu0
      %v1923 = vpop.f32.mrb[0].mxu0
      %v1924 = vadd.f32 %v1748, %v1923
      %v1925 = vpop.f32.mrb[0].mxu0
      %1926 = vmatprep.mubr.bf16.mxu0 %v1709
      %1927 = vmatmul.mubr.bf16.gmra.mrb[0].mxu0 %v1141
      %v1928 = vpop.f32.mrb[0].mxu0
      %v1929 = vadd.f32 %v1748, %v1928
      %v1930 = vpop.f32.mrb[0].mxu0
      %v1931 = vpop.f32.mrb[0].mxu0
      %v1932 = vadd.f32 %v1748, %v1931
      %v1933 = vpop.f32.mrb[0].mxu0
      %1934 = vmatprep.mubr.bf16.mxu0 %v1710
      %1935 = vmatmul.mubr.bf16.gmra.mrb[0].mxu0 %v1142
      %v1936 = vpop.f32.mrb[0].mxu0
      %v1937 = vadd.f32 %v1748, %v1936
      %v1938 = vpop.f32.mrb[0].mxu0
      %v1939 = vpop.f32.mrb[0].mxu0
      %v1940 = vadd.f32 %v1748, %v1939
      %v1941 = vpop.f32.mrb[0].mxu0
      %1942 = vdwg.mxu0
      %v1943 = vtanh.pop %v1881
      %v1944 = vtanh.pop %v1884
      %v1945 = vtanh.pop %v1889
      %v1946 = vtanh.pop %v1892
      %v1947 = vtanh.pop %v1897
      %v1948 = vtanh.pop %v1900
      %v1949 = vtanh.pop %v1905
      %v1950 = vtanh.pop %v1908
      %v1951 = vtanh.pop %v1913
      %v1952 = vtanh.pop %v1916
      %v1953 = vtanh.pop %v1921
      %v1954 = vtanh.pop %v1924
      %v1955 = vtanh.pop %v1929
      %v1956 = vtanh.pop %v1932
      %v1957 = vtanh.pop %v1937
      %v1958 = vtanh.pop %v1940
      %1959 = vst [vmem:[%s280] sm:$0xff] %v1943
      %1960 = vst [vmem:[%s280 + $0x8] sm:$0xff] %v1944
      %1961 = vst [vmem:[%s280 + $0x10] sm:$0xff] %v1945
      %1962 = vst [vmem:[%s280 + $0x18] sm:$0xff] %v1946
      %1963 = vst [vmem:[%s280 + $0x20] sm:$0xff] %v1947
      %1964 = vst [vmem:[%s280 + $0x28] sm:$0xff] %v1948
      %1965 = vst [vmem:[%s280 + $0x30] sm:$0xff] %v1949
      %1966 = vst [vmem:[%s280 + $0x38] sm:$0xff] %v1950
      %1967 = vst [vmem:[%s280 + $0x40] sm:$0xff] %v1951
      %1968 = vst [vmem:[%s280 + $0x48] sm:$0xff] %v1952
      %1969 = vst [vmem:[%s280 + $0x50] sm:$0xff] %v1953
      %1970 = vst [vmem:[%s280 + $0x58] sm:$0xff] %v1954
      %1971 = vst [vmem:[%s280 + $0x60] sm:$0xff] %v1955
      %1972 = vst [vmem:[%s280 + $0x68] sm:$0xff] %v1956
      %1973 = vst [vmem:[%s280 + $0x70] sm:$0xff] %v1957
      %1974 = vst [vmem:[%s280 + $0x78] sm:$0xff] %v1958
      %s1975 = smul.u32 16, %s18
      %p1976 = scmp.lt.s32.totalorder %s1975, 31
      %s1977 = scalar_select %p1976, %s1975, 31
      %s1978 = smul.addr %s1977, 8
      %s1979 = scalar_lea.vmem %s7, %s1978
      // Predicated region
      $region49: #{forward.1} parent=47 // pred_check
        %p1980 = pneg %p188
      $region50: #{forward.1} parent=47 // pred_check_branch
        %1982 = sbr.rel (%p1980) target = $region52
      $region51: #{forward.1} parent=47 // pred_region
        %s1983 = smul.u32 16, %s18
      $region52: #{forward.1} parent=47 // pred_fallthru
        _
    $region48: #{forward.1} parent=5 // pred_fallthru
      _
    %p1984 = scmp.le.s32.totalorder 2, %s13
    // Predicated region
    $region53: #{forward.1} parent=5 // pred_check
      %p1985 = pneg %p1984
    $region54: #{forward.1} parent=5 // pred_check_branch
      %1987 = sbr.rel (%p1985) target = $region56
    $region55: #{forward.1} parent=5 // pred_region
      %s1988 = ssub.s32 %s13, 2
      // Predicated region
      $region57: #{forward.1} parent=55 // pred_check
        %p1989 = pneg %p194
      $region58: #{forward.1} parent=55 // pred_check_branch
        %1991 = sbr.rel (%p1989) target = $region60
      $region59: #{forward.1} parent=55 // pred_region
        %s1992 = smul.u32 16, %s19
        %p1993 = scmp.lt.s32.totalorder %s1992, 31
        %s1994 = scalar_select %p1993, %s1992, 31
        %s1995 = smul.addr %s1994, 8
        %s1996 = scalar_lea.vmem %s7, %s1995
      $region60: #{forward.1} parent=55 // pred_fallthru
        _
    $region56: #{forward.1} parent=5 // pred_fallthru
      _
  $region6: #{forward.1} parent=0 // loop_footer
    %s17 = sadd.s32 1, %s13
  $region7: #{forward.1} parent=0 // loop_footer_branch
    %12 = sbr.rel target = $region3
  $region8: #{forward.1} parent=0 // loop_exit
    _

</llo_original>
